<compile_context>
chip_gen: v5e
topology: v5e:2x2
jax: 0.10.0
libtpu: 0.0.40
codegen_flags: <defaults>
</compile_context>

<pallas_src>
import functools

import jax
import jax.numpy as jnp
from jax import lax
from jax.experimental import pallas as pl
from jax.experimental.pallas import tpu as pltpu


def _round_up(x, m):
    return -(-x // m) * m


def _edge_encoding_kernel(paths_ref, score_ref, out_ref, *,
                          num_edges, max_path_distance):
    # paths_ref: (P, TR, TC) int16   hop-t edge index for pair (i, j); -1 = none
    # score_ref: (P, E)      float32 in SMEM; score[t, e] = <edge_vector[t], edge_attr[e]>
    # out_ref  : (TR, TC)    float32 tile of the edge-encoding matrix cij
    tr, tc = out_ref.shape
    acc = jnp.zeros((tr, tc), jnp.float32)
    cnt = jnp.zeros((tr, tc), jnp.float32)

    for t in range(max_path_distance):              # P is tiny & static -> unrolled
        idx_t = paths_ref[t].astype(jnp.int32)      # widen int16 -> int32 once per hop
        cnt = cnt + (idx_t >= 0).astype(jnp.float32)

        # Gather score[t, idx_t] from the small SMEM table.  Exactly one edge
        # index matches per element, so a compare+select chain (2 VPU ops per
        # (element, edge)) suffices: no per-edge accumulator RMW, no 3-D
        # one-hot intermediate; the accumulator is updated once per hop.
        gathered = jnp.zeros((tr, tc), jnp.float32)
        if num_edges <= 128:
            for e in range(num_edges):              # small E: static unroll
                gathered = jnp.where(idx_t == e, score_ref[t, e], gathered)
        else:
            def body(e, g):
                return jnp.where(idx_t == e, score_ref[t, e], g)
            unroll = 8 if num_edges % 8 == 0 else 1
            gathered = lax.fori_loop(0, num_edges, body, gathered, unroll=unroll)

        acc = acc + gathered

    # Mean over valid hops with nan_to_num semantics (cnt == 0 -> 0).  cnt only
    # takes the integer values 0..P, so a reciprocal table (P selects + one
    # multiply) replaces the multi-op f32 divide.
    inv = jnp.zeros((tr, tc), jnp.float32)
    for k in range(1, max_path_distance + 1):
        inv = jnp.where(cnt == float(k), 1.0 / k, inv)
    out_ref[...] = acc * inv


def edge_encoding(edge_attr, edge_vector, edge_paths, *,
                  block_rows=None, block_cols=None):
    """EdgeEncoding forward.

    edge_attr:   (num_edges, edge_dim)             float32
    edge_vector: (max_path_distance, edge_dim)     float32 (the nn.Parameter)
    edge_paths:  (max_path_distance, N, N) int     dense pairwise paths in edge
                 indices, padded with -1 (densified dict-of-dicts).
    Returns cij: (N, N) float32
    """
    num_edges, edge_dim = edge_attr.shape
    max_path_distance, edge_dim2 = edge_vector.shape
    assert edge_dim == edge_dim2
    p, n, n2 = edge_paths.shape
    assert p == max_path_distance and n == n2
    assert num_edges < 2 ** 15, "int16 path indices require num_edges < 32768"

    # (1) Hoisted per-hop score table (P, E): score[t, e] = <edge_vector[t], edge_attr[e]>.
    score = jnp.einsum("pd,ed->pe",
                       edge_vector.astype(jnp.float32),
                       edge_attr.astype(jnp.float32))

    # (2) Narrow path indices to int16 -- edge_paths dominates HBM traffic.
    paths = edge_paths if edge_paths.dtype == jnp.int16 else edge_paths.astype(jnp.int16)

    # (3) Tile sizes: lane-dense columns (multiple of 128), sublane-friendly
    #     rows (multiple of 16 for int16 packing).  Two gridded axes keep the
    #     per-step working set bounded independently of N (v7x: 64 MiB VMEM)
    #     and give >= 2 cells to shard across TensorCores for moderate N.
    if block_cols is None:
        block_cols = min(256, _round_up(n, 128))
    if block_rows is None:
        block_rows = min(128, _round_up(n, 16))

    # (4) Pad N up to the tile grid instead of collapsing to one full-size
    #     block; padded entries are -1 ("no hop") so they contribute 0 and are
    #     sliced off below.
    n_pad_r = _round_up(n, block_rows)
    n_pad_c = _round_up(n, block_cols)
    if (n_pad_r, n_pad_c) != (n, n):
        paths = jnp.pad(paths, ((0, 0), (0, n_pad_r - n), (0, n_pad_c - n)),
                        constant_values=-1)

    grid = (n_pad_r // block_rows, n_pad_c // block_cols)

    # Explicit VMEM budget: double-buffered paths + output tiles plus slack for
    # in-kernel accumulator spills; clamped well under v7x's 64 MiB.
    paths_tile = max_path_distance * block_rows * block_cols * 2
    out_tile = block_rows * block_cols * 4
    vmem_need = 2 * paths_tile + 2 * out_tile + 6 * out_tile
    vmem_limit = int(min(max(2 * vmem_need, 16 * 2 ** 20), 48 * 2 ** 20))

    kernel = functools.partial(
        _edge_encoding_kernel,
        num_edges=num_edges,
        max_path_distance=max_path_distance,
    )

    out = pl.pallas_call(
        kernel,
        out_shape=jax.ShapeDtypeStruct((n_pad_r, n_pad_c), jnp.float32),
        grid=grid,
        in_specs=[
            pl.BlockSpec((max_path_distance, block_rows, block_cols),
                         lambda i, j: (0, i, j)),
            pl.BlockSpec(memory_space=pltpu.MemorySpace.SMEM),   # (P, E) score table
        ],
        out_specs=pl.BlockSpec((block_rows, block_cols), lambda i, j: (i, j)),
        compiler_params=pltpu.CompilerParams(
            dimension_semantics=("parallel", "parallel"),
            vmem_limit_bytes=vmem_limit,
        ),
    )(paths, score)

    if (n_pad_r, n_pad_c) != (n, n):
        out = out[:n, :n]
    return out


if __name__ == "__main__":
    # Small shapes consistent with the module.
    edge_dim = 16           # D
    max_path_distance = 4   # P
    num_nodes = 16          # N
    num_edges = 32          # E

    key = jax.random.PRNGKey(0)
    k_vec, k_attr, k_len, k_idx = jax.random.split(key, 4)

    edge_vector = jax.random.normal(
        k_vec, (max_path_distance, edge_dim), dtype=jnp.float32)
    edge_attr = jax.random.normal(
        k_attr, (num_edges, edge_dim), dtype=jnp.float32)

    # Dense edge_paths: for each (src, dst) a path of length L in [0, P] of
    # random edge indices, padded with -1 (stand-in for the dict-of-dicts).
    lengths = jax.random.randint(
        k_len, (num_nodes, num_nodes), 0, max_path_distance + 1)
    raw_idx = jax.random.randint(
        k_idx, (max_path_distance, num_nodes, num_nodes), 0, num_edges,
        dtype=jnp.int32)
    hop = jnp.arange(max_path_distance)[:, None, None]
    edge_paths = jnp.where(hop < lengths[None, :, :], raw_idx, -1).astype(jnp.int32)

    out = edge_encoding(edge_attr, edge_vector, edge_paths)
    out = jax.block_until_ready(out)

    # Pure-JAX reference of the PyTorch forward (vectorized over dense paths).
    score = jnp.sum(edge_vector[:, None, :] * edge_attr[None, :, :], axis=-1)
    valid = edge_paths >= 0
    idx_safe = jnp.where(valid, edge_paths, 0)
    gathered = jax.vmap(lambda row, idx: row[idx])(score, idx_safe)      # (P, N, N)
    sums = jnp.sum(jnp.where(valid, gathered, 0.0), axis=0)
    cnt = jnp.sum(valid.astype(jnp.float32), axis=0)
    ref = jnp.where(cnt > 0, sums / jnp.maximum(cnt, 1.0), 0.0)          # nan_to_num

    assert out.shape == (num_nodes, num_nodes), out.shape
    assert jnp.allclose(out, ref, atol=1e-5, rtol=1e-5), "mismatch vs reference"

    print("KERNEL_OK")
</pallas_src>

<mosaic_0001>
module attributes {stable_mosaic.version = 11 : i64} {
  func.func @_edge_encoding_kernel(%arg0: i32, %arg1: i32, %arg2: memref<4x16x128xi16, #tpu.memory_space<vmem>>, %arg3: memref<4x32xf32, #tpu.memory_space<smem>>, %arg4: memref<16x128xf32, #tpu.memory_space<vmem>>) attributes {dimension_semantics = [#tpu.dimension_semantics<parallel>, #tpu.dimension_semantics<parallel>], iteration_bounds = array<i64: 1, 1>, scalar_prefetch = 0 : i64, scratch_operands = 0 : i64, tpu.core_type = #tpu.core_type<tc>, window_params = [{transform_indices = @transform_0, window_bounds = array<i64: 4, 16, 128>}, {transform_indices = @transform_1, window_bounds = array<i64: 4, 32>}, {transform_indices = @transform_2, window_bounds = array<i64: 16, 128>}]} {
    %cst = arith.constant 0.000000e+00 : f32
    %0 = vector.broadcast %cst : f32 to vector<16x128xf32>
    %cst_0 = arith.constant 0.000000e+00 : f32
    %1 = vector.broadcast %cst_0 : f32 to vector<16x128xf32>
    %c0 = arith.constant 0 : index
    %c0_1 = arith.constant 0 : index
    %c0_2 = arith.constant 0 : index
    %2 = vector.load %arg2[%c0, %c0_1, %c0_2] : memref<4x16x128xi16, #tpu.memory_space<vmem>>, vector<1x16x128xi16>
    %3 = vector.shape_cast %2 : vector<1x16x128xi16> to vector<16x128xi16>
    %4 = arith.extsi %3 : vector<16x128xi16> to vector<16x128xi32>
    %c0_i32 = arith.constant 0 : i32
    %5 = vector.broadcast %c0_i32 : i32 to vector<16x128xi32>
    %6 = arith.cmpi sge, %4, %5 : vector<16x128xi32>
    %7 = arith.extui %6 : vector<16x128xi1> to vector<16x128xi32>
    %8 = arith.sitofp %7 : vector<16x128xi32> to vector<16x128xf32>
    %9 = arith.addf %1, %8 : vector<16x128xf32>
    %cst_3 = arith.constant 0.000000e+00 : f32
    %10 = vector.broadcast %cst_3 : f32 to vector<16x128xf32>
    %c0_i32_4 = arith.constant 0 : i32
    %11 = vector.broadcast %c0_i32_4 : i32 to vector<16x128xi32>
    %12 = arith.cmpi eq, %4, %11 : vector<16x128xi32>
    %c0_5 = arith.constant 0 : index
    %c0_6 = arith.constant 0 : index
    %13 = memref.load %arg3[%c0_5, %c0_6] : memref<4x32xf32, #tpu.memory_space<smem>>
    %14 = vector.broadcast %13 : f32 to vector<16x128xf32>
    %15 = arith.select %12, %14, %10 : vector<16x128xi1>, vector<16x128xf32>
    %c1_i32 = arith.constant 1 : i32
    %16 = vector.broadcast %c1_i32 : i32 to vector<16x128xi32>
    %17 = arith.cmpi eq, %4, %16 : vector<16x128xi32>
    %c0_7 = arith.constant 0 : index
    %c1 = arith.constant 1 : index
    %18 = memref.load %arg3[%c0_7, %c1] : memref<4x32xf32, #tpu.memory_space<smem>>
    %19 = vector.broadcast %18 : f32 to vector<16x128xf32>
    %20 = arith.select %17, %19, %15 : vector<16x128xi1>, vector<16x128xf32>
    %c2_i32 = arith.constant 2 : i32
    %21 = vector.broadcast %c2_i32 : i32 to vector<16x128xi32>
    %22 = arith.cmpi eq, %4, %21 : vector<16x128xi32>
    %c0_8 = arith.constant 0 : index
    %c2 = arith.constant 2 : index
    %23 = memref.load %arg3[%c0_8, %c2] : memref<4x32xf32, #tpu.memory_space<smem>>
    %24 = vector.broadcast %23 : f32 to vector<16x128xf32>
    %25 = arith.select %22, %24, %20 : vector<16x128xi1>, vector<16x128xf32>
    %c3_i32 = arith.constant 3 : i32
    %26 = vector.broadcast %c3_i32 : i32 to vector<16x128xi32>
    %27 = arith.cmpi eq, %4, %26 : vector<16x128xi32>
    %c0_9 = arith.constant 0 : index
    %c3 = arith.constant 3 : index
    %28 = memref.load %arg3[%c0_9, %c3] : memref<4x32xf32, #tpu.memory_space<smem>>
    %29 = vector.broadcast %28 : f32 to vector<16x128xf32>
    %30 = arith.select %27, %29, %25 : vector<16x128xi1>, vector<16x128xf32>
    %c4_i32 = arith.constant 4 : i32
    %31 = vector.broadcast %c4_i32 : i32 to vector<16x128xi32>
    %32 = arith.cmpi eq, %4, %31 : vector<16x128xi32>
    %c0_10 = arith.constant 0 : index
    %c4 = arith.constant 4 : index
    %33 = memref.load %arg3[%c0_10, %c4] : memref<4x32xf32, #tpu.memory_space<smem>>
    %34 = vector.broadcast %33 : f32 to vector<16x128xf32>
    %35 = arith.select %32, %34, %30 : vector<16x128xi1>, vector<16x128xf32>
    %c5_i32 = arith.constant 5 : i32
    %36 = vector.broadcast %c5_i32 : i32 to vector<16x128xi32>
    %37 = arith.cmpi eq, %4, %36 : vector<16x128xi32>
    %c0_11 = arith.constant 0 : index
    %c5 = arith.constant 5 : index
    %38 = memref.load %arg3[%c0_11, %c5] : memref<4x32xf32, #tpu.memory_space<smem>>
    %39 = vector.broadcast %38 : f32 to vector<16x128xf32>
    %40 = arith.select %37, %39, %35 : vector<16x128xi1>, vector<16x128xf32>
    %c6_i32 = arith.constant 6 : i32
    %41 = vector.broadcast %c6_i32 : i32 to vector<16x128xi32>
    %42 = arith.cmpi eq, %4, %41 : vector<16x128xi32>
    %c0_12 = arith.constant 0 : index
    %c6 = arith.constant 6 : index
    %43 = memref.load %arg3[%c0_12, %c6] : memref<4x32xf32, #tpu.memory_space<smem>>
    %44 = vector.broadcast %43 : f32 to vector<16x128xf32>
    %45 = arith.select %42, %44, %40 : vector<16x128xi1>, vector<16x128xf32>
    %c7_i32 = arith.constant 7 : i32
    %46 = vector.broadcast %c7_i32 : i32 to vector<16x128xi32>
    %47 = arith.cmpi eq, %4, %46 : vector<16x128xi32>
    %c0_13 = arith.constant 0 : index
    %c7 = arith.constant 7 : index
    %48 = memref.load %arg3[%c0_13, %c7] : memref<4x32xf32, #tpu.memory_space<smem>>
    %49 = vector.broadcast %48 : f32 to vector<16x128xf32>
    %50 = arith.select %47, %49, %45 : vector<16x128xi1>, vector<16x128xf32>
    %c8_i32 = arith.constant 8 : i32
    %51 = vector.broadcast %c8_i32 : i32 to vector<16x128xi32>
    %52 = arith.cmpi eq, %4, %51 : vector<16x128xi32>
    %c0_14 = arith.constant 0 : index
    %c8 = arith.constant 8 : index
    %53 = memref.load %arg3[%c0_14, %c8] : memref<4x32xf32, #tpu.memory_space<smem>>
    %54 = vector.broadcast %53 : f32 to vector<16x128xf32>
    %55 = arith.select %52, %54, %50 : vector<16x128xi1>, vector<16x128xf32>
    %c9_i32 = arith.constant 9 : i32
    %56 = vector.broadcast %c9_i32 : i32 to vector<16x128xi32>
    %57 = arith.cmpi eq, %4, %56 : vector<16x128xi32>
    %c0_15 = arith.constant 0 : index
    %c9 = arith.constant 9 : index
    %58 = memref.load %arg3[%c0_15, %c9] : memref<4x32xf32, #tpu.memory_space<smem>>
    %59 = vector.broadcast %58 : f32 to vector<16x128xf32>
    %60 = arith.select %57, %59, %55 : vector<16x128xi1>, vector<16x128xf32>
    %c10_i32 = arith.constant 10 : i32
    %61 = vector.broadcast %c10_i32 : i32 to vector<16x128xi32>
    %62 = arith.cmpi eq, %4, %61 : vector<16x128xi32>
    %c0_16 = arith.constant 0 : index
    %c10 = arith.constant 10 : index
    %63 = memref.load %arg3[%c0_16, %c10] : memref<4x32xf32, #tpu.memory_space<smem>>
    %64 = vector.broadcast %63 : f32 to vector<16x128xf32>
    %65 = arith.select %62, %64, %60 : vector<16x128xi1>, vector<16x128xf32>
    %c11_i32 = arith.constant 11 : i32
    %66 = vector.broadcast %c11_i32 : i32 to vector<16x128xi32>
    %67 = arith.cmpi eq, %4, %66 : vector<16x128xi32>
    %c0_17 = arith.constant 0 : index
    %c11 = arith.constant 11 : index
    %68 = memref.load %arg3[%c0_17, %c11] : memref<4x32xf32, #tpu.memory_space<smem>>
    %69 = vector.broadcast %68 : f32 to vector<16x128xf32>
    %70 = arith.select %67, %69, %65 : vector<16x128xi1>, vector<16x128xf32>
    %c12_i32 = arith.constant 12 : i32
    %71 = vector.broadcast %c12_i32 : i32 to vector<16x128xi32>
    %72 = arith.cmpi eq, %4, %71 : vector<16x128xi32>
    %c0_18 = arith.constant 0 : index
    %c12 = arith.constant 12 : index
    %73 = memref.load %arg3[%c0_18, %c12] : memref<4x32xf32, #tpu.memory_space<smem>>
    %74 = vector.broadcast %73 : f32 to vector<16x128xf32>
    %75 = arith.select %72, %74, %70 : vector<16x128xi1>, vector<16x128xf32>
    %c13_i32 = arith.constant 13 : i32
    %76 = vector.broadcast %c13_i32 : i32 to vector<16x128xi32>
    %77 = arith.cmpi eq, %4, %76 : vector<16x128xi32>
    %c0_19 = arith.constant 0 : index
    %c13 = arith.constant 13 : index
    %78 = memref.load %arg3[%c0_19, %c13] : memref<4x32xf32, #tpu.memory_space<smem>>
    %79 = vector.broadcast %78 : f32 to vector<16x128xf32>
    %80 = arith.select %77, %79, %75 : vector<16x128xi1>, vector<16x128xf32>
    %c14_i32 = arith.constant 14 : i32
    %81 = vector.broadcast %c14_i32 : i32 to vector<16x128xi32>
    %82 = arith.cmpi eq, %4, %81 : vector<16x128xi32>
    %c0_20 = arith.constant 0 : index
    %c14 = arith.constant 14 : index
    %83 = memref.load %arg3[%c0_20, %c14] : memref<4x32xf32, #tpu.memory_space<smem>>
    %84 = vector.broadcast %83 : f32 to vector<16x128xf32>
    %85 = arith.select %82, %84, %80 : vector<16x128xi1>, vector<16x128xf32>
    %c15_i32 = arith.constant 15 : i32
    %86 = vector.broadcast %c15_i32 : i32 to vector<16x128xi32>
    %87 = arith.cmpi eq, %4, %86 : vector<16x128xi32>
    %c0_21 = arith.constant 0 : index
    %c15 = arith.constant 15 : index
    %88 = memref.load %arg3[%c0_21, %c15] : memref<4x32xf32, #tpu.memory_space<smem>>
    %89 = vector.broadcast %88 : f32 to vector<16x128xf32>
    %90 = arith.select %87, %89, %85 : vector<16x128xi1>, vector<16x128xf32>
    %c16_i32 = arith.constant 16 : i32
    %91 = vector.broadcast %c16_i32 : i32 to vector<16x128xi32>
    %92 = arith.cmpi eq, %4, %91 : vector<16x128xi32>
    %c0_22 = arith.constant 0 : index
    %c16 = arith.constant 16 : index
    %93 = memref.load %arg3[%c0_22, %c16] : memref<4x32xf32, #tpu.memory_space<smem>>
    %94 = vector.broadcast %93 : f32 to vector<16x128xf32>
    %95 = arith.select %92, %94, %90 : vector<16x128xi1>, vector<16x128xf32>
    %c17_i32 = arith.constant 17 : i32
    %96 = vector.broadcast %c17_i32 : i32 to vector<16x128xi32>
    %97 = arith.cmpi eq, %4, %96 : vector<16x128xi32>
    %c0_23 = arith.constant 0 : index
    %c17 = arith.constant 17 : index
    %98 = memref.load %arg3[%c0_23, %c17] : memref<4x32xf32, #tpu.memory_space<smem>>
    %99 = vector.broadcast %98 : f32 to vector<16x128xf32>
    %100 = arith.select %97, %99, %95 : vector<16x128xi1>, vector<16x128xf32>
    %c18_i32 = arith.constant 18 : i32
    %101 = vector.broadcast %c18_i32 : i32 to vector<16x128xi32>
    %102 = arith.cmpi eq, %4, %101 : vector<16x128xi32>
    %c0_24 = arith.constant 0 : index
    %c18 = arith.constant 18 : index
    %103 = memref.load %arg3[%c0_24, %c18] : memref<4x32xf32, #tpu.memory_space<smem>>
    %104 = vector.broadcast %103 : f32 to vector<16x128xf32>
    %105 = arith.select %102, %104, %100 : vector<16x128xi1>, vector<16x128xf32>
    %c19_i32 = arith.constant 19 : i32
    %106 = vector.broadcast %c19_i32 : i32 to vector<16x128xi32>
    %107 = arith.cmpi eq, %4, %106 : vector<16x128xi32>
    %c0_25 = arith.constant 0 : index
    %c19 = arith.constant 19 : index
    %108 = memref.load %arg3[%c0_25, %c19] : memref<4x32xf32, #tpu.memory_space<smem>>
    %109 = vector.broadcast %108 : f32 to vector<16x128xf32>
    %110 = arith.select %107, %109, %105 : vector<16x128xi1>, vector<16x128xf32>
    %c20_i32 = arith.constant 20 : i32
    %111 = vector.broadcast %c20_i32 : i32 to vector<16x128xi32>
    %112 = arith.cmpi eq, %4, %111 : vector<16x128xi32>
    %c0_26 = arith.constant 0 : index
    %c20 = arith.constant 20 : index
    %113 = memref.load %arg3[%c0_26, %c20] : memref<4x32xf32, #tpu.memory_space<smem>>
    %114 = vector.broadcast %113 : f32 to vector<16x128xf32>
    %115 = arith.select %112, %114, %110 : vector<16x128xi1>, vector<16x128xf32>
    %c21_i32 = arith.constant 21 : i32
    %116 = vector.broadcast %c21_i32 : i32 to vector<16x128xi32>
    %117 = arith.cmpi eq, %4, %116 : vector<16x128xi32>
    %c0_27 = arith.constant 0 : index
    %c21 = arith.constant 21 : index
    %118 = memref.load %arg3[%c0_27, %c21] : memref<4x32xf32, #tpu.memory_space<smem>>
    %119 = vector.broadcast %118 : f32 to vector<16x128xf32>
    %120 = arith.select %117, %119, %115 : vector<16x128xi1>, vector<16x128xf32>
    %c22_i32 = arith.constant 22 : i32
    %121 = vector.broadcast %c22_i32 : i32 to vector<16x128xi32>
    %122 = arith.cmpi eq, %4, %121 : vector<16x128xi32>
    %c0_28 = arith.constant 0 : index
    %c22 = arith.constant 22 : index
    %123 = memref.load %arg3[%c0_28, %c22] : memref<4x32xf32, #tpu.memory_space<smem>>
    %124 = vector.broadcast %123 : f32 to vector<16x128xf32>
    %125 = arith.select %122, %124, %120 : vector<16x128xi1>, vector<16x128xf32>
    %c23_i32 = arith.constant 23 : i32
    %126 = vector.broadcast %c23_i32 : i32 to vector<16x128xi32>
    %127 = arith.cmpi eq, %4, %126 : vector<16x128xi32>
    %c0_29 = arith.constant 0 : index
    %c23 = arith.constant 23 : index
    %128 = memref.load %arg3[%c0_29, %c23] : memref<4x32xf32, #tpu.memory_space<smem>>
    %129 = vector.broadcast %128 : f32 to vector<16x128xf32>
    %130 = arith.select %127, %129, %125 : vector<16x128xi1>, vector<16x128xf32>
    %c24_i32 = arith.constant 24 : i32
    %131 = vector.broadcast %c24_i32 : i32 to vector<16x128xi32>
    %132 = arith.cmpi eq, %4, %131 : vector<16x128xi32>
    %c0_30 = arith.constant 0 : index
    %c24 = arith.constant 24 : index
    %133 = memref.load %arg3[%c0_30, %c24] : memref<4x32xf32, #tpu.memory_space<smem>>
    %134 = vector.broadcast %133 : f32 to vector<16x128xf32>
    %135 = arith.select %132, %134, %130 : vector<16x128xi1>, vector<16x128xf32>
    %c25_i32 = arith.constant 25 : i32
    %136 = vector.broadcast %c25_i32 : i32 to vector<16x128xi32>
    %137 = arith.cmpi eq, %4, %136 : vector<16x128xi32>
    %c0_31 = arith.constant 0 : index
    %c25 = arith.constant 25 : index
    %138 = memref.load %arg3[%c0_31, %c25] : memref<4x32xf32, #tpu.memory_space<smem>>
    %139 = vector.broadcast %138 : f32 to vector<16x128xf32>
    %140 = arith.select %137, %139, %135 : vector<16x128xi1>, vector<16x128xf32>
    %c26_i32 = arith.constant 26 : i32
    %141 = vector.broadcast %c26_i32 : i32 to vector<16x128xi32>
    %142 = arith.cmpi eq, %4, %141 : vector<16x128xi32>
    %c0_32 = arith.constant 0 : index
    %c26 = arith.constant 26 : index
    %143 = memref.load %arg3[%c0_32, %c26] : memref<4x32xf32, #tpu.memory_space<smem>>
    %144 = vector.broadcast %143 : f32 to vector<16x128xf32>
    %145 = arith.select %142, %144, %140 : vector<16x128xi1>, vector<16x128xf32>
    %c27_i32 = arith.constant 27 : i32
    %146 = vector.broadcast %c27_i32 : i32 to vector<16x128xi32>
    %147 = arith.cmpi eq, %4, %146 : vector<16x128xi32>
    %c0_33 = arith.constant 0 : index
    %c27 = arith.constant 27 : index
    %148 = memref.load %arg3[%c0_33, %c27] : memref<4x32xf32, #tpu.memory_space<smem>>
    %149 = vector.broadcast %148 : f32 to vector<16x128xf32>
    %150 = arith.select %147, %149, %145 : vector<16x128xi1>, vector<16x128xf32>
    %c28_i32 = arith.constant 28 : i32
    %151 = vector.broadcast %c28_i32 : i32 to vector<16x128xi32>
    %152 = arith.cmpi eq, %4, %151 : vector<16x128xi32>
    %c0_34 = arith.constant 0 : index
    %c28 = arith.constant 28 : index
    %153 = memref.load %arg3[%c0_34, %c28] : memref<4x32xf32, #tpu.memory_space<smem>>
    %154 = vector.broadcast %153 : f32 to vector<16x128xf32>
    %155 = arith.select %152, %154, %150 : vector<16x128xi1>, vector<16x128xf32>
    %c29_i32 = arith.constant 29 : i32
    %156 = vector.broadcast %c29_i32 : i32 to vector<16x128xi32>
    %157 = arith.cmpi eq, %4, %156 : vector<16x128xi32>
    %c0_35 = arith.constant 0 : index
    %c29 = arith.constant 29 : index
    %158 = memref.load %arg3[%c0_35, %c29] : memref<4x32xf32, #tpu.memory_space<smem>>
    %159 = vector.broadcast %158 : f32 to vector<16x128xf32>
    %160 = arith.select %157, %159, %155 : vector<16x128xi1>, vector<16x128xf32>
    %c30_i32 = arith.constant 30 : i32
    %161 = vector.broadcast %c30_i32 : i32 to vector<16x128xi32>
    %162 = arith.cmpi eq, %4, %161 : vector<16x128xi32>
    %c0_36 = arith.constant 0 : index
    %c30 = arith.constant 30 : index
    %163 = memref.load %arg3[%c0_36, %c30] : memref<4x32xf32, #tpu.memory_space<smem>>
    %164 = vector.broadcast %163 : f32 to vector<16x128xf32>
    %165 = arith.select %162, %164, %160 : vector<16x128xi1>, vector<16x128xf32>
    %c31_i32 = arith.constant 31 : i32
    %166 = vector.broadcast %c31_i32 : i32 to vector<16x128xi32>
    %167 = arith.cmpi eq, %4, %166 : vector<16x128xi32>
    %c0_37 = arith.constant 0 : index
    %c31 = arith.constant 31 : index
    %168 = memref.load %arg3[%c0_37, %c31] : memref<4x32xf32, #tpu.memory_space<smem>>
    %169 = vector.broadcast %168 : f32 to vector<16x128xf32>
    %170 = arith.select %167, %169, %165 : vector<16x128xi1>, vector<16x128xf32>
    %171 = arith.addf %0, %170 : vector<16x128xf32>
    %c1_38 = arith.constant 1 : index
    %c0_39 = arith.constant 0 : index
    %c0_40 = arith.constant 0 : index
    %172 = vector.load %arg2[%c1_38, %c0_39, %c0_40] : memref<4x16x128xi16, #tpu.memory_space<vmem>>, vector<1x16x128xi16>
    %173 = vector.shape_cast %172 : vector<1x16x128xi16> to vector<16x128xi16>
    %174 = arith.extsi %173 : vector<16x128xi16> to vector<16x128xi32>
    %c0_i32_41 = arith.constant 0 : i32
    %175 = vector.broadcast %c0_i32_41 : i32 to vector<16x128xi32>
    %176 = arith.cmpi sge, %174, %175 : vector<16x128xi32>
    %177 = arith.extui %176 : vector<16x128xi1> to vector<16x128xi32>
    %178 = arith.sitofp %177 : vector<16x128xi32> to vector<16x128xf32>
    %179 = arith.addf %9, %178 : vector<16x128xf32>
    %cst_42 = arith.constant 0.000000e+00 : f32
    %180 = vector.broadcast %cst_42 : f32 to vector<16x128xf32>
    %c0_i32_43 = arith.constant 0 : i32
    %181 = vector.broadcast %c0_i32_43 : i32 to vector<16x128xi32>
    %182 = arith.cmpi eq, %174, %181 : vector<16x128xi32>
    %c1_44 = arith.constant 1 : index
    %c0_45 = arith.constant 0 : index
    %183 = memref.load %arg3[%c1_44, %c0_45] : memref<4x32xf32, #tpu.memory_space<smem>>
    %184 = vector.broadcast %183 : f32 to vector<16x128xf32>
    %185 = arith.select %182, %184, %180 : vector<16x128xi1>, vector<16x128xf32>
    %c1_i32_46 = arith.constant 1 : i32
    %186 = vector.broadcast %c1_i32_46 : i32 to vector<16x128xi32>
    %187 = arith.cmpi eq, %174, %186 : vector<16x128xi32>
    %c1_47 = arith.constant 1 : index
    %c1_48 = arith.constant 1 : index
    %188 = memref.load %arg3[%c1_47, %c1_48] : memref<4x32xf32, #tpu.memory_space<smem>>
    %189 = vector.broadcast %188 : f32 to vector<16x128xf32>
    %190 = arith.select %187, %189, %185 : vector<16x128xi1>, vector<16x128xf32>
    %c2_i32_49 = arith.constant 2 : i32
    %191 = vector.broadcast %c2_i32_49 : i32 to vector<16x128xi32>
    %192 = arith.cmpi eq, %174, %191 : vector<16x128xi32>
    %c1_50 = arith.constant 1 : index
    %c2_51 = arith.constant 2 : index
    %193 = memref.load %arg3[%c1_50, %c2_51] : memref<4x32xf32, #tpu.memory_space<smem>>
    %194 = vector.broadcast %193 : f32 to vector<16x128xf32>
    %195 = arith.select %192, %194, %190 : vector<16x128xi1>, vector<16x128xf32>
    %c3_i32_52 = arith.constant 3 : i32
    %196 = vector.broadcast %c3_i32_52 : i32 to vector<16x128xi32>
    %197 = arith.cmpi eq, %174, %196 : vector<16x128xi32>
    %c1_53 = arith.constant 1 : index
    %c3_54 = arith.constant 3 : index
    %198 = memref.load %arg3[%c1_53, %c3_54] : memref<4x32xf32, #tpu.memory_space<smem>>
    %199 = vector.broadcast %198 : f32 to vector<16x128xf32>
    %200 = arith.select %197, %199, %195 : vector<16x128xi1>, vector<16x128xf32>
    %c4_i32_55 = arith.constant 4 : i32
    %201 = vector.broadcast %c4_i32_55 : i32 to vector<16x128xi32>
    %202 = arith.cmpi eq, %174, %201 : vector<16x128xi32>
    %c1_56 = arith.constant 1 : index
    %c4_57 = arith.constant 4 : index
    %203 = memref.load %arg3[%c1_56, %c4_57] : memref<4x32xf32, #tpu.memory_space<smem>>
    %204 = vector.broadcast %203 : f32 to vector<16x128xf32>
    %205 = arith.select %202, %204, %200 : vector<16x128xi1>, vector<16x128xf32>
    %c5_i32_58 = arith.constant 5 : i32
    %206 = vector.broadcast %c5_i32_58 : i32 to vector<16x128xi32>
    %207 = arith.cmpi eq, %174, %206 : vector<16x128xi32>
    %c1_59 = arith.constant 1 : index
    %c5_60 = arith.constant 5 : index
    %208 = memref.load %arg3[%c1_59, %c5_60] : memref<4x32xf32, #tpu.memory_space<smem>>
    %209 = vector.broadcast %208 : f32 to vector<16x128xf32>
    %210 = arith.select %207, %209, %205 : vector<16x128xi1>, vector<16x128xf32>
    %c6_i32_61 = arith.constant 6 : i32
    %211 = vector.broadcast %c6_i32_61 : i32 to vector<16x128xi32>
    %212 = arith.cmpi eq, %174, %211 : vector<16x128xi32>
    %c1_62 = arith.constant 1 : index
    %c6_63 = arith.constant 6 : index
    %213 = memref.load %arg3[%c1_62, %c6_63] : memref<4x32xf32, #tpu.memory_space<smem>>
    %214 = vector.broadcast %213 : f32 to vector<16x128xf32>
    %215 = arith.select %212, %214, %210 : vector<16x128xi1>, vector<16x128xf32>
    %c7_i32_64 = arith.constant 7 : i32
    %216 = vector.broadcast %c7_i32_64 : i32 to vector<16x128xi32>
    %217 = arith.cmpi eq, %174, %216 : vector<16x128xi32>
    %c1_65 = arith.constant 1 : index
    %c7_66 = arith.constant 7 : index
    %218 = memref.load %arg3[%c1_65, %c7_66] : memref<4x32xf32, #tpu.memory_space<smem>>
    %219 = vector.broadcast %218 : f32 to vector<16x128xf32>
    %220 = arith.select %217, %219, %215 : vector<16x128xi1>, vector<16x128xf32>
    %c8_i32_67 = arith.constant 8 : i32
    %221 = vector.broadcast %c8_i32_67 : i32 to vector<16x128xi32>
    %222 = arith.cmpi eq, %174, %221 : vector<16x128xi32>
    %c1_68 = arith.constant 1 : index
    %c8_69 = arith.constant 8 : index
    %223 = memref.load %arg3[%c1_68, %c8_69] : memref<4x32xf32, #tpu.memory_space<smem>>
    %224 = vector.broadcast %223 : f32 to vector<16x128xf32>
    %225 = arith.select %222, %224, %220 : vector<16x128xi1>, vector<16x128xf32>
    %c9_i32_70 = arith.constant 9 : i32
    %226 = vector.broadcast %c9_i32_70 : i32 to vector<16x128xi32>
    %227 = arith.cmpi eq, %174, %226 : vector<16x128xi32>
    %c1_71 = arith.constant 1 : index
    %c9_72 = arith.constant 9 : index
    %228 = memref.load %arg3[%c1_71, %c9_72] : memref<4x32xf32, #tpu.memory_space<smem>>
    %229 = vector.broadcast %228 : f32 to vector<16x128xf32>
    %230 = arith.select %227, %229, %225 : vector<16x128xi1>, vector<16x128xf32>
    %c10_i32_73 = arith.constant 10 : i32
    %231 = vector.broadcast %c10_i32_73 : i32 to vector<16x128xi32>
    %232 = arith.cmpi eq, %174, %231 : vector<16x128xi32>
    %c1_74 = arith.constant 1 : index
    %c10_75 = arith.constant 10 : index
    %233 = memref.load %arg3[%c1_74, %c10_75] : memref<4x32xf32, #tpu.memory_space<smem>>
    %234 = vector.broadcast %233 : f32 to vector<16x128xf32>
    %235 = arith.select %232, %234, %230 : vector<16x128xi1>, vector<16x128xf32>
    %c11_i32_76 = arith.constant 11 : i32
    %236 = vector.broadcast %c11_i32_76 : i32 to vector<16x128xi32>
    %237 = arith.cmpi eq, %174, %236 : vector<16x128xi32>
    %c1_77 = arith.constant 1 : index
    %c11_78 = arith.constant 11 : index
    %238 = memref.load %arg3[%c1_77, %c11_78] : memref<4x32xf32, #tpu.memory_space<smem>>
    %239 = vector.broadcast %238 : f32 to vector<16x128xf32>
    %240 = arith.select %237, %239, %235 : vector<16x128xi1>, vector<16x128xf32>
    %c12_i32_79 = arith.constant 12 : i32
    %241 = vector.broadcast %c12_i32_79 : i32 to vector<16x128xi32>
    %242 = arith.cmpi eq, %174, %241 : vector<16x128xi32>
    %c1_80 = arith.constant 1 : index
    %c12_81 = arith.constant 12 : index
    %243 = memref.load %arg3[%c1_80, %c12_81] : memref<4x32xf32, #tpu.memory_space<smem>>
    %244 = vector.broadcast %243 : f32 to vector<16x128xf32>
    %245 = arith.select %242, %244, %240 : vector<16x128xi1>, vector<16x128xf32>
    %c13_i32_82 = arith.constant 13 : i32
    %246 = vector.broadcast %c13_i32_82 : i32 to vector<16x128xi32>
    %247 = arith.cmpi eq, %174, %246 : vector<16x128xi32>
    %c1_83 = arith.constant 1 : index
    %c13_84 = arith.constant 13 : index
    %248 = memref.load %arg3[%c1_83, %c13_84] : memref<4x32xf32, #tpu.memory_space<smem>>
    %249 = vector.broadcast %248 : f32 to vector<16x128xf32>
    %250 = arith.select %247, %249, %245 : vector<16x128xi1>, vector<16x128xf32>
    %c14_i32_85 = arith.constant 14 : i32
    %251 = vector.broadcast %c14_i32_85 : i32 to vector<16x128xi32>
    %252 = arith.cmpi eq, %174, %251 : vector<16x128xi32>
    %c1_86 = arith.constant 1 : index
    %c14_87 = arith.constant 14 : index
    %253 = memref.load %arg3[%c1_86, %c14_87] : memref<4x32xf32, #tpu.memory_space<smem>>
    %254 = vector.broadcast %253 : f32 to vector<16x128xf32>
    %255 = arith.select %252, %254, %250 : vector<16x128xi1>, vector<16x128xf32>
    %c15_i32_88 = arith.constant 15 : i32
    %256 = vector.broadcast %c15_i32_88 : i32 to vector<16x128xi32>
    %257 = arith.cmpi eq, %174, %256 : vector<16x128xi32>
    %c1_89 = arith.constant 1 : index
    %c15_90 = arith.constant 15 : index
    %258 = memref.load %arg3[%c1_89, %c15_90] : memref<4x32xf32, #tpu.memory_space<smem>>
    %259 = vector.broadcast %258 : f32 to vector<16x128xf32>
    %260 = arith.select %257, %259, %255 : vector<16x128xi1>, vector<16x128xf32>
    %c16_i32_91 = arith.constant 16 : i32
    %261 = vector.broadcast %c16_i32_91 : i32 to vector<16x128xi32>
    %262 = arith.cmpi eq, %174, %261 : vector<16x128xi32>
    %c1_92 = arith.constant 1 : index
    %c16_93 = arith.constant 16 : index
    %263 = memref.load %arg3[%c1_92, %c16_93] : memref<4x32xf32, #tpu.memory_space<smem>>
    %264 = vector.broadcast %263 : f32 to vector<16x128xf32>
    %265 = arith.select %262, %264, %260 : vector<16x128xi1>, vector<16x128xf32>
    %c17_i32_94 = arith.constant 17 : i32
    %266 = vector.broadcast %c17_i32_94 : i32 to vector<16x128xi32>
    %267 = arith.cmpi eq, %174, %266 : vector<16x128xi32>
    %c1_95 = arith.constant 1 : index
    %c17_96 = arith.constant 17 : index
    %268 = memref.load %arg3[%c1_95, %c17_96] : memref<4x32xf32, #tpu.memory_space<smem>>
    %269 = vector.broadcast %268 : f32 to vector<16x128xf32>
    %270 = arith.select %267, %269, %265 : vector<16x128xi1>, vector<16x128xf32>
    %c18_i32_97 = arith.constant 18 : i32
    %271 = vector.broadcast %c18_i32_97 : i32 to vector<16x128xi32>
    %272 = arith.cmpi eq, %174, %271 : vector<16x128xi32>
    %c1_98 = arith.constant 1 : index
    %c18_99 = arith.constant 18 : index
    %273 = memref.load %arg3[%c1_98, %c18_99] : memref<4x32xf32, #tpu.memory_space<smem>>
    %274 = vector.broadcast %273 : f32 to vector<16x128xf32>
    %275 = arith.select %272, %274, %270 : vector<16x128xi1>, vector<16x128xf32>
    %c19_i32_100 = arith.constant 19 : i32
    %276 = vector.broadcast %c19_i32_100 : i32 to vector<16x128xi32>
    %277 = arith.cmpi eq, %174, %276 : vector<16x128xi32>
    %c1_101 = arith.constant 1 : index
    %c19_102 = arith.constant 19 : index
    %278 = memref.load %arg3[%c1_101, %c19_102] : memref<4x32xf32, #tpu.memory_space<smem>>
    %279 = vector.broadcast %278 : f32 to vector<16x128xf32>
    %280 = arith.select %277, %279, %275 : vector<16x128xi1>, vector<16x128xf32>
    %c20_i32_103 = arith.constant 20 : i32
    %281 = vector.broadcast %c20_i32_103 : i32 to vector<16x128xi32>
    %282 = arith.cmpi eq, %174, %281 : vector<16x128xi32>
    %c1_104 = arith.constant 1 : index
    %c20_105 = arith.constant 20 : index
    %283 = memref.load %arg3[%c1_104, %c20_105] : memref<4x32xf32, #tpu.memory_space<smem>>
    %284 = vector.broadcast %283 : f32 to vector<16x128xf32>
    %285 = arith.select %282, %284, %280 : vector<16x128xi1>, vector<16x128xf32>
    %c21_i32_106 = arith.constant 21 : i32
    %286 = vector.broadcast %c21_i32_106 : i32 to vector<16x128xi32>
    %287 = arith.cmpi eq, %174, %286 : vector<16x128xi32>
    %c1_107 = arith.constant 1 : index
    %c21_108 = arith.constant 21 : index
    %288 = memref.load %arg3[%c1_107, %c21_108] : memref<4x32xf32, #tpu.memory_space<smem>>
    %289 = vector.broadcast %288 : f32 to vector<16x128xf32>
    %290 = arith.select %287, %289, %285 : vector<16x128xi1>, vector<16x128xf32>
    %c22_i32_109 = arith.constant 22 : i32
    %291 = vector.broadcast %c22_i32_109 : i32 to vector<16x128xi32>
    %292 = arith.cmpi eq, %174, %291 : vector<16x128xi32>
    %c1_110 = arith.constant 1 : index
    %c22_111 = arith.constant 22 : index
    %293 = memref.load %arg3[%c1_110, %c22_111] : memref<4x32xf32, #tpu.memory_space<smem>>
    %294 = vector.broadcast %293 : f32 to vector<16x128xf32>
    %295 = arith.select %292, %294, %290 : vector<16x128xi1>, vector<16x128xf32>
    %c23_i32_112 = arith.constant 23 : i32
    %296 = vector.broadcast %c23_i32_112 : i32 to vector<16x128xi32>
    %297 = arith.cmpi eq, %174, %296 : vector<16x128xi32>
    %c1_113 = arith.constant 1 : index
    %c23_114 = arith.constant 23 : index
    %298 = memref.load %arg3[%c1_113, %c23_114] : memref<4x32xf32, #tpu.memory_space<smem>>
    %299 = vector.broadcast %298 : f32 to vector<16x128xf32>
    %300 = arith.select %297, %299, %295 : vector<16x128xi1>, vector<16x128xf32>
    %c24_i32_115 = arith.constant 24 : i32
    %301 = vector.broadcast %c24_i32_115 : i32 to vector<16x128xi32>
    %302 = arith.cmpi eq, %174, %301 : vector<16x128xi32>
    %c1_116 = arith.constant 1 : index
    %c24_117 = arith.constant 24 : index
    %303 = memref.load %arg3[%c1_116, %c24_117] : memref<4x32xf32, #tpu.memory_space<smem>>
    %304 = vector.broadcast %303 : f32 to vector<16x128xf32>
    %305 = arith.select %302, %304, %300 : vector<16x128xi1>, vector<16x128xf32>
    %c25_i32_118 = arith.constant 25 : i32
    %306 = vector.broadcast %c25_i32_118 : i32 to vector<16x128xi32>
    %307 = arith.cmpi eq, %174, %306 : vector<16x128xi32>
    %c1_119 = arith.constant 1 : index
    %c25_120 = arith.constant 25 : index
    %308 = memref.load %arg3[%c1_119, %c25_120] : memref<4x32xf32, #tpu.memory_space<smem>>
    %309 = vector.broadcast %308 : f32 to vector<16x128xf32>
    %310 = arith.select %307, %309, %305 : vector<16x128xi1>, vector<16x128xf32>
    %c26_i32_121 = arith.constant 26 : i32
    %311 = vector.broadcast %c26_i32_121 : i32 to vector<16x128xi32>
    %312 = arith.cmpi eq, %174, %311 : vector<16x128xi32>
    %c1_122 = arith.constant 1 : index
    %c26_123 = arith.constant 26 : index
    %313 = memref.load %arg3[%c1_122, %c26_123] : memref<4x32xf32, #tpu.memory_space<smem>>
    %314 = vector.broadcast %313 : f32 to vector<16x128xf32>
    %315 = arith.select %312, %314, %310 : vector<16x128xi1>, vector<16x128xf32>
    %c27_i32_124 = arith.constant 27 : i32
    %316 = vector.broadcast %c27_i32_124 : i32 to vector<16x128xi32>
    %317 = arith.cmpi eq, %174, %316 : vector<16x128xi32>
    %c1_125 = arith.constant 1 : index
    %c27_126 = arith.constant 27 : index
    %318 = memref.load %arg3[%c1_125, %c27_126] : memref<4x32xf32, #tpu.memory_space<smem>>
    %319 = vector.broadcast %318 : f32 to vector<16x128xf32>
    %320 = arith.select %317, %319, %315 : vector<16x128xi1>, vector<16x128xf32>
    %c28_i32_127 = arith.constant 28 : i32
    %321 = vector.broadcast %c28_i32_127 : i32 to vector<16x128xi32>
    %322 = arith.cmpi eq, %174, %321 : vector<16x128xi32>
    %c1_128 = arith.constant 1 : index
    %c28_129 = arith.constant 28 : index
    %323 = memref.load %arg3[%c1_128, %c28_129] : memref<4x32xf32, #tpu.memory_space<smem>>
    %324 = vector.broadcast %323 : f32 to vector<16x128xf32>
    %325 = arith.select %322, %324, %320 : vector<16x128xi1>, vector<16x128xf32>
    %c29_i32_130 = arith.constant 29 : i32
    %326 = vector.broadcast %c29_i32_130 : i32 to vector<16x128xi32>
    %327 = arith.cmpi eq, %174, %326 : vector<16x128xi32>
    %c1_131 = arith.constant 1 : index
    %c29_132 = arith.constant 29 : index
    %328 = memref.load %arg3[%c1_131, %c29_132] : memref<4x32xf32, #tpu.memory_space<smem>>
    %329 = vector.broadcast %328 : f32 to vector<16x128xf32>
    %330 = arith.select %327, %329, %325 : vector<16x128xi1>, vector<16x128xf32>
    %c30_i32_133 = arith.constant 30 : i32
    %331 = vector.broadcast %c30_i32_133 : i32 to vector<16x128xi32>
    %332 = arith.cmpi eq, %174, %331 : vector<16x128xi32>
    %c1_134 = arith.constant 1 : index
    %c30_135 = arith.constant 30 : index
    %333 = memref.load %arg3[%c1_134, %c30_135] : memref<4x32xf32, #tpu.memory_space<smem>>
    %334 = vector.broadcast %333 : f32 to vector<16x128xf32>
    %335 = arith.select %332, %334, %330 : vector<16x128xi1>, vector<16x128xf32>
    %c31_i32_136 = arith.constant 31 : i32
    %336 = vector.broadcast %c31_i32_136 : i32 to vector<16x128xi32>
    %337 = arith.cmpi eq, %174, %336 : vector<16x128xi32>
    %c1_137 = arith.constant 1 : index
    %c31_138 = arith.constant 31 : index
    %338 = memref.load %arg3[%c1_137, %c31_138] : memref<4x32xf32, #tpu.memory_space<smem>>
    %339 = vector.broadcast %338 : f32 to vector<16x128xf32>
    %340 = arith.select %337, %339, %335 : vector<16x128xi1>, vector<16x128xf32>
    %341 = arith.addf %171, %340 : vector<16x128xf32>
    %c2_139 = arith.constant 2 : index
    %c0_140 = arith.constant 0 : index
    %c0_141 = arith.constant 0 : index
    %342 = vector.load %arg2[%c2_139, %c0_140, %c0_141] : memref<4x16x128xi16, #tpu.memory_space<vmem>>, vector<1x16x128xi16>
    %343 = vector.shape_cast %342 : vector<1x16x128xi16> to vector<16x128xi16>
    %344 = arith.extsi %343 : vector<16x128xi16> to vector<16x128xi32>
    %c0_i32_142 = arith.constant 0 : i32
    %345 = vector.broadcast %c0_i32_142 : i32 to vector<16x128xi32>
    %346 = arith.cmpi sge, %344, %345 : vector<16x128xi32>
    %347 = arith.extui %346 : vector<16x128xi1> to vector<16x128xi32>
    %348 = arith.sitofp %347 : vector<16x128xi32> to vector<16x128xf32>
    %349 = arith.addf %179, %348 : vector<16x128xf32>
    %cst_143 = arith.constant 0.000000e+00 : f32
    %350 = vector.broadcast %cst_143 : f32 to vector<16x128xf32>
    %c0_i32_144 = arith.constant 0 : i32
    %351 = vector.broadcast %c0_i32_144 : i32 to vector<16x128xi32>
    %352 = arith.cmpi eq, %344, %351 : vector<16x128xi32>
    %c2_145 = arith.constant 2 : index
    %c0_146 = arith.constant 0 : index
    %353 = memref.load %arg3[%c2_145, %c0_146] : memref<4x32xf32, #tpu.memory_space<smem>>
    %354 = vector.broadcast %353 : f32 to vector<16x128xf32>
    %355 = arith.select %352, %354, %350 : vector<16x128xi1>, vector<16x128xf32>
    %c1_i32_147 = arith.constant 1 : i32
    %356 = vector.broadcast %c1_i32_147 : i32 to vector<16x128xi32>
    %357 = arith.cmpi eq, %344, %356 : vector<16x128xi32>
    %c2_148 = arith.constant 2 : index
    %c1_149 = arith.constant 1 : index
    %358 = memref.load %arg3[%c2_148, %c1_149] : memref<4x32xf32, #tpu.memory_space<smem>>
    %359 = vector.broadcast %358 : f32 to vector<16x128xf32>
    %360 = arith.select %357, %359, %355 : vector<16x128xi1>, vector<16x128xf32>
    %c2_i32_150 = arith.constant 2 : i32
    %361 = vector.broadcast %c2_i32_150 : i32 to vector<16x128xi32>
    %362 = arith.cmpi eq, %344, %361 : vector<16x128xi32>
    %c2_151 = arith.constant 2 : index
    %c2_152 = arith.constant 2 : index
    %363 = memref.load %arg3[%c2_151, %c2_152] : memref<4x32xf32, #tpu.memory_space<smem>>
    %364 = vector.broadcast %363 : f32 to vector<16x128xf32>
    %365 = arith.select %362, %364, %360 : vector<16x128xi1>, vector<16x128xf32>
    %c3_i32_153 = arith.constant 3 : i32
    %366 = vector.broadcast %c3_i32_153 : i32 to vector<16x128xi32>
    %367 = arith.cmpi eq, %344, %366 : vector<16x128xi32>
    %c2_154 = arith.constant 2 : index
    %c3_155 = arith.constant 3 : index
    %368 = memref.load %arg3[%c2_154, %c3_155] : memref<4x32xf32, #tpu.memory_space<smem>>
    %369 = vector.broadcast %368 : f32 to vector<16x128xf32>
    %370 = arith.select %367, %369, %365 : vector<16x128xi1>, vector<16x128xf32>
    %c4_i32_156 = arith.constant 4 : i32
    %371 = vector.broadcast %c4_i32_156 : i32 to vector<16x128xi32>
    %372 = arith.cmpi eq, %344, %371 : vector<16x128xi32>
    %c2_157 = arith.constant 2 : index
    %c4_158 = arith.constant 4 : index
    %373 = memref.load %arg3[%c2_157, %c4_158] : memref<4x32xf32, #tpu.memory_space<smem>>
    %374 = vector.broadcast %373 : f32 to vector<16x128xf32>
    %375 = arith.select %372, %374, %370 : vector<16x128xi1>, vector<16x128xf32>
    %c5_i32_159 = arith.constant 5 : i32
    %376 = vector.broadcast %c5_i32_159 : i32 to vector<16x128xi32>
    %377 = arith.cmpi eq, %344, %376 : vector<16x128xi32>
    %c2_160 = arith.constant 2 : index
    %c5_161 = arith.constant 5 : index
    %378 = memref.load %arg3[%c2_160, %c5_161] : memref<4x32xf32, #tpu.memory_space<smem>>
    %379 = vector.broadcast %378 : f32 to vector<16x128xf32>
    %380 = arith.select %377, %379, %375 : vector<16x128xi1>, vector<16x128xf32>
    %c6_i32_162 = arith.constant 6 : i32
    %381 = vector.broadcast %c6_i32_162 : i32 to vector<16x128xi32>
    %382 = arith.cmpi eq, %344, %381 : vector<16x128xi32>
    %c2_163 = arith.constant 2 : index
    %c6_164 = arith.constant 6 : index
    %383 = memref.load %arg3[%c2_163, %c6_164] : memref<4x32xf32, #tpu.memory_space<smem>>
    %384 = vector.broadcast %383 : f32 to vector<16x128xf32>
    %385 = arith.select %382, %384, %380 : vector<16x128xi1>, vector<16x128xf32>
    %c7_i32_165 = arith.constant 7 : i32
    %386 = vector.broadcast %c7_i32_165 : i32 to vector<16x128xi32>
    %387 = arith.cmpi eq, %344, %386 : vector<16x128xi32>
    %c2_166 = arith.constant 2 : index
    %c7_167 = arith.constant 7 : index
    %388 = memref.load %arg3[%c2_166, %c7_167] : memref<4x32xf32, #tpu.memory_space<smem>>
    %389 = vector.broadcast %388 : f32 to vector<16x128xf32>
    %390 = arith.select %387, %389, %385 : vector<16x128xi1>, vector<16x128xf32>
    %c8_i32_168 = arith.constant 8 : i32
    %391 = vector.broadcast %c8_i32_168 : i32 to vector<16x128xi32>
    %392 = arith.cmpi eq, %344, %391 : vector<16x128xi32>
    %c2_169 = arith.constant 2 : index
    %c8_170 = arith.constant 8 : index
    %393 = memref.load %arg3[%c2_169, %c8_170] : memref<4x32xf32, #tpu.memory_space<smem>>
    %394 = vector.broadcast %393 : f32 to vector<16x128xf32>
    %395 = arith.select %392, %394, %390 : vector<16x128xi1>, vector<16x128xf32>
    %c9_i32_171 = arith.constant 9 : i32
    %396 = vector.broadcast %c9_i32_171 : i32 to vector<16x128xi32>
    %397 = arith.cmpi eq, %344, %396 : vector<16x128xi32>
    %c2_172 = arith.constant 2 : index
    %c9_173 = arith.constant 9 : index
    %398 = memref.load %arg3[%c2_172, %c9_173] : memref<4x32xf32, #tpu.memory_space<smem>>
    %399 = vector.broadcast %398 : f32 to vector<16x128xf32>
    %400 = arith.select %397, %399, %395 : vector<16x128xi1>, vector<16x128xf32>
    %c10_i32_174 = arith.constant 10 : i32
    %401 = vector.broadcast %c10_i32_174 : i32 to vector<16x128xi32>
    %402 = arith.cmpi eq, %344, %401 : vector<16x128xi32>
    %c2_175 = arith.constant 2 : index
    %c10_176 = arith.constant 10 : index
    %403 = memref.load %arg3[%c2_175, %c10_176] : memref<4x32xf32, #tpu.memory_space<smem>>
    %404 = vector.broadcast %403 : f32 to vector<16x128xf32>
    %405 = arith.select %402, %404, %400 : vector<16x128xi1>, vector<16x128xf32>
    %c11_i32_177 = arith.constant 11 : i32
    %406 = vector.broadcast %c11_i32_177 : i32 to vector<16x128xi32>
    %407 = arith.cmpi eq, %344, %406 : vector<16x128xi32>
    %c2_178 = arith.constant 2 : index
    %c11_179 = arith.constant 11 : index
    %408 = memref.load %arg3[%c2_178, %c11_179] : memref<4x32xf32, #tpu.memory_space<smem>>
    %409 = vector.broadcast %408 : f32 to vector<16x128xf32>
    %410 = arith.select %407, %409, %405 : vector<16x128xi1>, vector<16x128xf32>
    %c12_i32_180 = arith.constant 12 : i32
    %411 = vector.broadcast %c12_i32_180 : i32 to vector<16x128xi32>
    %412 = arith.cmpi eq, %344, %411 : vector<16x128xi32>
    %c2_181 = arith.constant 2 : index
    %c12_182 = arith.constant 12 : index
    %413 = memref.load %arg3[%c2_181, %c12_182] : memref<4x32xf32, #tpu.memory_space<smem>>
    %414 = vector.broadcast %413 : f32 to vector<16x128xf32>
    %415 = arith.select %412, %414, %410 : vector<16x128xi1>, vector<16x128xf32>
    %c13_i32_183 = arith.constant 13 : i32
    %416 = vector.broadcast %c13_i32_183 : i32 to vector<16x128xi32>
    %417 = arith.cmpi eq, %344, %416 : vector<16x128xi32>
    %c2_184 = arith.constant 2 : index
    %c13_185 = arith.constant 13 : index
    %418 = memref.load %arg3[%c2_184, %c13_185] : memref<4x32xf32, #tpu.memory_space<smem>>
    %419 = vector.broadcast %418 : f32 to vector<16x128xf32>
    %420 = arith.select %417, %419, %415 : vector<16x128xi1>, vector<16x128xf32>
    %c14_i32_186 = arith.constant 14 : i32
    %421 = vector.broadcast %c14_i32_186 : i32 to vector<16x128xi32>
    %422 = arith.cmpi eq, %344, %421 : vector<16x128xi32>
    %c2_187 = arith.constant 2 : index
    %c14_188 = arith.constant 14 : index
    %423 = memref.load %arg3[%c2_187, %c14_188] : memref<4x32xf32, #tpu.memory_space<smem>>
    %424 = vector.broadcast %423 : f32 to vector<16x128xf32>
    %425 = arith.select %422, %424, %420 : vector<16x128xi1>, vector<16x128xf32>
    %c15_i32_189 = arith.constant 15 : i32
    %426 = vector.broadcast %c15_i32_189 : i32 to vector<16x128xi32>
    %427 = arith.cmpi eq, %344, %426 : vector<16x128xi32>
    %c2_190 = arith.constant 2 : index
    %c15_191 = arith.constant 15 : index
    %428 = memref.load %arg3[%c2_190, %c15_191] : memref<4x32xf32, #tpu.memory_space<smem>>
    %429 = vector.broadcast %428 : f32 to vector<16x128xf32>
    %430 = arith.select %427, %429, %425 : vector<16x128xi1>, vector<16x128xf32>
    %c16_i32_192 = arith.constant 16 : i32
    %431 = vector.broadcast %c16_i32_192 : i32 to vector<16x128xi32>
    %432 = arith.cmpi eq, %344, %431 : vector<16x128xi32>
    %c2_193 = arith.constant 2 : index
    %c16_194 = arith.constant 16 : index
    %433 = memref.load %arg3[%c2_193, %c16_194] : memref<4x32xf32, #tpu.memory_space<smem>>
    %434 = vector.broadcast %433 : f32 to vector<16x128xf32>
    %435 = arith.select %432, %434, %430 : vector<16x128xi1>, vector<16x128xf32>
    %c17_i32_195 = arith.constant 17 : i32
    %436 = vector.broadcast %c17_i32_195 : i32 to vector<16x128xi32>
    %437 = arith.cmpi eq, %344, %436 : vector<16x128xi32>
    %c2_196 = arith.constant 2 : index
    %c17_197 = arith.constant 17 : index
    %438 = memref.load %arg3[%c2_196, %c17_197] : memref<4x32xf32, #tpu.memory_space<smem>>
    %439 = vector.broadcast %438 : f32 to vector<16x128xf32>
    %440 = arith.select %437, %439, %435 : vector<16x128xi1>, vector<16x128xf32>
    %c18_i32_198 = arith.constant 18 : i32
    %441 = vector.broadcast %c18_i32_198 : i32 to vector<16x128xi32>
    %442 = arith.cmpi eq, %344, %441 : vector<16x128xi32>
    %c2_199 = arith.constant 2 : index
    %c18_200 = arith.constant 18 : index
    %443 = memref.load %arg3[%c2_199, %c18_200] : memref<4x32xf32, #tpu.memory_space<smem>>
    %444 = vector.broadcast %443 : f32 to vector<16x128xf32>
    %445 = arith.select %442, %444, %440 : vector<16x128xi1>, vector<16x128xf32>
    %c19_i32_201 = arith.constant 19 : i32
    %446 = vector.broadcast %c19_i32_201 : i32 to vector<16x128xi32>
    %447 = arith.cmpi eq, %344, %446 : vector<16x128xi32>
    %c2_202 = arith.constant 2 : index
    %c19_203 = arith.constant 19 : index
    %448 = memref.load %arg3[%c2_202, %c19_203] : memref<4x32xf32, #tpu.memory_space<smem>>
    %449 = vector.broadcast %448 : f32 to vector<16x128xf32>
    %450 = arith.select %447, %449, %445 : vector<16x128xi1>, vector<16x128xf32>
    %c20_i32_204 = arith.constant 20 : i32
    %451 = vector.broadcast %c20_i32_204 : i32 to vector<16x128xi32>
    %452 = arith.cmpi eq, %344, %451 : vector<16x128xi32>
    %c2_205 = arith.constant 2 : index
    %c20_206 = arith.constant 20 : index
    %453 = memref.load %arg3[%c2_205, %c20_206] : memref<4x32xf32, #tpu.memory_space<smem>>
    %454 = vector.broadcast %453 : f32 to vector<16x128xf32>
    %455 = arith.select %452, %454, %450 : vector<16x128xi1>, vector<16x128xf32>
    %c21_i32_207 = arith.constant 21 : i32
    %456 = vector.broadcast %c21_i32_207 : i32 to vector<16x128xi32>
    %457 = arith.cmpi eq, %344, %456 : vector<16x128xi32>
    %c2_208 = arith.constant 2 : index
    %c21_209 = arith.constant 21 : index
    %458 = memref.load %arg3[%c2_208, %c21_209] : memref<4x32xf32, #tpu.memory_space<smem>>
    %459 = vector.broadcast %458 : f32 to vector<16x128xf32>
    %460 = arith.select %457, %459, %455 : vector<16x128xi1>, vector<16x128xf32>
    %c22_i32_210 = arith.constant 22 : i32
    %461 = vector.broadcast %c22_i32_210 : i32 to vector<16x128xi32>
    %462 = arith.cmpi eq, %344, %461 : vector<16x128xi32>
    %c2_211 = arith.constant 2 : index
    %c22_212 = arith.constant 22 : index
    %463 = memref.load %arg3[%c2_211, %c22_212] : memref<4x32xf32, #tpu.memory_space<smem>>
    %464 = vector.broadcast %463 : f32 to vector<16x128xf32>
    %465 = arith.select %462, %464, %460 : vector<16x128xi1>, vector<16x128xf32>
    %c23_i32_213 = arith.constant 23 : i32
    %466 = vector.broadcast %c23_i32_213 : i32 to vector<16x128xi32>
    %467 = arith.cmpi eq, %344, %466 : vector<16x128xi32>
    %c2_214 = arith.constant 2 : index
    %c23_215 = arith.constant 23 : index
    %468 = memref.load %arg3[%c2_214, %c23_215] : memref<4x32xf32, #tpu.memory_space<smem>>
    %469 = vector.broadcast %468 : f32 to vector<16x128xf32>
    %470 = arith.select %467, %469, %465 : vector<16x128xi1>, vector<16x128xf32>
    %c24_i32_216 = arith.constant 24 : i32
    %471 = vector.broadcast %c24_i32_216 : i32 to vector<16x128xi32>
    %472 = arith.cmpi eq, %344, %471 : vector<16x128xi32>
    %c2_217 = arith.constant 2 : index
    %c24_218 = arith.constant 24 : index
    %473 = memref.load %arg3[%c2_217, %c24_218] : memref<4x32xf32, #tpu.memory_space<smem>>
    %474 = vector.broadcast %473 : f32 to vector<16x128xf32>
    %475 = arith.select %472, %474, %470 : vector<16x128xi1>, vector<16x128xf32>
    %c25_i32_219 = arith.constant 25 : i32
    %476 = vector.broadcast %c25_i32_219 : i32 to vector<16x128xi32>
    %477 = arith.cmpi eq, %344, %476 : vector<16x128xi32>
    %c2_220 = arith.constant 2 : index
    %c25_221 = arith.constant 25 : index
    %478 = memref.load %arg3[%c2_220, %c25_221] : memref<4x32xf32, #tpu.memory_space<smem>>
    %479 = vector.broadcast %478 : f32 to vector<16x128xf32>
    %480 = arith.select %477, %479, %475 : vector<16x128xi1>, vector<16x128xf32>
    %c26_i32_222 = arith.constant 26 : i32
    %481 = vector.broadcast %c26_i32_222 : i32 to vector<16x128xi32>
    %482 = arith.cmpi eq, %344, %481 : vector<16x128xi32>
    %c2_223 = arith.constant 2 : index
    %c26_224 = arith.constant 26 : index
    %483 = memref.load %arg3[%c2_223, %c26_224] : memref<4x32xf32, #tpu.memory_space<smem>>
    %484 = vector.broadcast %483 : f32 to vector<16x128xf32>
    %485 = arith.select %482, %484, %480 : vector<16x128xi1>, vector<16x128xf32>
    %c27_i32_225 = arith.constant 27 : i32
    %486 = vector.broadcast %c27_i32_225 : i32 to vector<16x128xi32>
    %487 = arith.cmpi eq, %344, %486 : vector<16x128xi32>
    %c2_226 = arith.constant 2 : index
    %c27_227 = arith.constant 27 : index
    %488 = memref.load %arg3[%c2_226, %c27_227] : memref<4x32xf32, #tpu.memory_space<smem>>
    %489 = vector.broadcast %488 : f32 to vector<16x128xf32>
    %490 = arith.select %487, %489, %485 : vector<16x128xi1>, vector<16x128xf32>
    %c28_i32_228 = arith.constant 28 : i32
    %491 = vector.broadcast %c28_i32_228 : i32 to vector<16x128xi32>
    %492 = arith.cmpi eq, %344, %491 : vector<16x128xi32>
    %c2_229 = arith.constant 2 : index
    %c28_230 = arith.constant 28 : index
    %493 = memref.load %arg3[%c2_229, %c28_230] : memref<4x32xf32, #tpu.memory_space<smem>>
    %494 = vector.broadcast %493 : f32 to vector<16x128xf32>
    %495 = arith.select %492, %494, %490 : vector<16x128xi1>, vector<16x128xf32>
    %c29_i32_231 = arith.constant 29 : i32
    %496 = vector.broadcast %c29_i32_231 : i32 to vector<16x128xi32>
    %497 = arith.cmpi eq, %344, %496 : vector<16x128xi32>
    %c2_232 = arith.constant 2 : index
    %c29_233 = arith.constant 29 : index
    %498 = memref.load %arg3[%c2_232, %c29_233] : memref<4x32xf32, #tpu.memory_space<smem>>
    %499 = vector.broadcast %498 : f32 to vector<16x128xf32>
    %500 = arith.select %497, %499, %495 : vector<16x128xi1>, vector<16x128xf32>
    %c30_i32_234 = arith.constant 30 : i32
    %501 = vector.broadcast %c30_i32_234 : i32 to vector<16x128xi32>
    %502 = arith.cmpi eq, %344, %501 : vector<16x128xi32>
    %c2_235 = arith.constant 2 : index
    %c30_236 = arith.constant 30 : index
    %503 = memref.load %arg3[%c2_235, %c30_236] : memref<4x32xf32, #tpu.memory_space<smem>>
    %504 = vector.broadcast %503 : f32 to vector<16x128xf32>
    %505 = arith.select %502, %504, %500 : vector<16x128xi1>, vector<16x128xf32>
    %c31_i32_237 = arith.constant 31 : i32
    %506 = vector.broadcast %c31_i32_237 : i32 to vector<16x128xi32>
    %507 = arith.cmpi eq, %344, %506 : vector<16x128xi32>
    %c2_238 = arith.constant 2 : index
    %c31_239 = arith.constant 31 : index
    %508 = memref.load %arg3[%c2_238, %c31_239] : memref<4x32xf32, #tpu.memory_space<smem>>
    %509 = vector.broadcast %508 : f32 to vector<16x128xf32>
    %510 = arith.select %507, %509, %505 : vector<16x128xi1>, vector<16x128xf32>
    %511 = arith.addf %341, %510 : vector<16x128xf32>
    %c3_240 = arith.constant 3 : index
    %c0_241 = arith.constant 0 : index
    %c0_242 = arith.constant 0 : index
    %512 = vector.load %arg2[%c3_240, %c0_241, %c0_242] : memref<4x16x128xi16, #tpu.memory_space<vmem>>, vector<1x16x128xi16>
    %513 = vector.shape_cast %512 : vector<1x16x128xi16> to vector<16x128xi16>
    %514 = arith.extsi %513 : vector<16x128xi16> to vector<16x128xi32>
    %c0_i32_243 = arith.constant 0 : i32
    %515 = vector.broadcast %c0_i32_243 : i32 to vector<16x128xi32>
    %516 = arith.cmpi sge, %514, %515 : vector<16x128xi32>
    %517 = arith.extui %516 : vector<16x128xi1> to vector<16x128xi32>
    %518 = arith.sitofp %517 : vector<16x128xi32> to vector<16x128xf32>
    %519 = arith.addf %349, %518 : vector<16x128xf32>
    %cst_244 = arith.constant 0.000000e+00 : f32
    %520 = vector.broadcast %cst_244 : f32 to vector<16x128xf32>
    %c0_i32_245 = arith.constant 0 : i32
    %521 = vector.broadcast %c0_i32_245 : i32 to vector<16x128xi32>
    %522 = arith.cmpi eq, %514, %521 : vector<16x128xi32>
    %c3_246 = arith.constant 3 : index
    %c0_247 = arith.constant 0 : index
    %523 = memref.load %arg3[%c3_246, %c0_247] : memref<4x32xf32, #tpu.memory_space<smem>>
    %524 = vector.broadcast %523 : f32 to vector<16x128xf32>
    %525 = arith.select %522, %524, %520 : vector<16x128xi1>, vector<16x128xf32>
    %c1_i32_248 = arith.constant 1 : i32
    %526 = vector.broadcast %c1_i32_248 : i32 to vector<16x128xi32>
    %527 = arith.cmpi eq, %514, %526 : vector<16x128xi32>
    %c3_249 = arith.constant 3 : index
    %c1_250 = arith.constant 1 : index
    %528 = memref.load %arg3[%c3_249, %c1_250] : memref<4x32xf32, #tpu.memory_space<smem>>
    %529 = vector.broadcast %528 : f32 to vector<16x128xf32>
    %530 = arith.select %527, %529, %525 : vector<16x128xi1>, vector<16x128xf32>
    %c2_i32_251 = arith.constant 2 : i32
    %531 = vector.broadcast %c2_i32_251 : i32 to vector<16x128xi32>
    %532 = arith.cmpi eq, %514, %531 : vector<16x128xi32>
    %c3_252 = arith.constant 3 : index
    %c2_253 = arith.constant 2 : index
    %533 = memref.load %arg3[%c3_252, %c2_253] : memref<4x32xf32, #tpu.memory_space<smem>>
    %534 = vector.broadcast %533 : f32 to vector<16x128xf32>
    %535 = arith.select %532, %534, %530 : vector<16x128xi1>, vector<16x128xf32>
    %c3_i32_254 = arith.constant 3 : i32
    %536 = vector.broadcast %c3_i32_254 : i32 to vector<16x128xi32>
    %537 = arith.cmpi eq, %514, %536 : vector<16x128xi32>
    %c3_255 = arith.constant 3 : index
    %c3_256 = arith.constant 3 : index
    %538 = memref.load %arg3[%c3_255, %c3_256] : memref<4x32xf32, #tpu.memory_space<smem>>
    %539 = vector.broadcast %538 : f32 to vector<16x128xf32>
    %540 = arith.select %537, %539, %535 : vector<16x128xi1>, vector<16x128xf32>
    %c4_i32_257 = arith.constant 4 : i32
    %541 = vector.broadcast %c4_i32_257 : i32 to vector<16x128xi32>
    %542 = arith.cmpi eq, %514, %541 : vector<16x128xi32>
    %c3_258 = arith.constant 3 : index
    %c4_259 = arith.constant 4 : index
    %543 = memref.load %arg3[%c3_258, %c4_259] : memref<4x32xf32, #tpu.memory_space<smem>>
    %544 = vector.broadcast %543 : f32 to vector<16x128xf32>
    %545 = arith.select %542, %544, %540 : vector<16x128xi1>, vector<16x128xf32>
    %c5_i32_260 = arith.constant 5 : i32
    %546 = vector.broadcast %c5_i32_260 : i32 to vector<16x128xi32>
    %547 = arith.cmpi eq, %514, %546 : vector<16x128xi32>
    %c3_261 = arith.constant 3 : index
    %c5_262 = arith.constant 5 : index
    %548 = memref.load %arg3[%c3_261, %c5_262] : memref<4x32xf32, #tpu.memory_space<smem>>
    %549 = vector.broadcast %548 : f32 to vector<16x128xf32>
    %550 = arith.select %547, %549, %545 : vector<16x128xi1>, vector<16x128xf32>
    %c6_i32_263 = arith.constant 6 : i32
    %551 = vector.broadcast %c6_i32_263 : i32 to vector<16x128xi32>
    %552 = arith.cmpi eq, %514, %551 : vector<16x128xi32>
    %c3_264 = arith.constant 3 : index
    %c6_265 = arith.constant 6 : index
    %553 = memref.load %arg3[%c3_264, %c6_265] : memref<4x32xf32, #tpu.memory_space<smem>>
    %554 = vector.broadcast %553 : f32 to vector<16x128xf32>
    %555 = arith.select %552, %554, %550 : vector<16x128xi1>, vector<16x128xf32>
    %c7_i32_266 = arith.constant 7 : i32
    %556 = vector.broadcast %c7_i32_266 : i32 to vector<16x128xi32>
    %557 = arith.cmpi eq, %514, %556 : vector<16x128xi32>
    %c3_267 = arith.constant 3 : index
    %c7_268 = arith.constant 7 : index
    %558 = memref.load %arg3[%c3_267, %c7_268] : memref<4x32xf32, #tpu.memory_space<smem>>
    %559 = vector.broadcast %558 : f32 to vector<16x128xf32>
    %560 = arith.select %557, %559, %555 : vector<16x128xi1>, vector<16x128xf32>
    %c8_i32_269 = arith.constant 8 : i32
    %561 = vector.broadcast %c8_i32_269 : i32 to vector<16x128xi32>
    %562 = arith.cmpi eq, %514, %561 : vector<16x128xi32>
    %c3_270 = arith.constant 3 : index
    %c8_271 = arith.constant 8 : index
    %563 = memref.load %arg3[%c3_270, %c8_271] : memref<4x32xf32, #tpu.memory_space<smem>>
    %564 = vector.broadcast %563 : f32 to vector<16x128xf32>
    %565 = arith.select %562, %564, %560 : vector<16x128xi1>, vector<16x128xf32>
    %c9_i32_272 = arith.constant 9 : i32
    %566 = vector.broadcast %c9_i32_272 : i32 to vector<16x128xi32>
    %567 = arith.cmpi eq, %514, %566 : vector<16x128xi32>
    %c3_273 = arith.constant 3 : index
    %c9_274 = arith.constant 9 : index
    %568 = memref.load %arg3[%c3_273, %c9_274] : memref<4x32xf32, #tpu.memory_space<smem>>
    %569 = vector.broadcast %568 : f32 to vector<16x128xf32>
    %570 = arith.select %567, %569, %565 : vector<16x128xi1>, vector<16x128xf32>
    %c10_i32_275 = arith.constant 10 : i32
    %571 = vector.broadcast %c10_i32_275 : i32 to vector<16x128xi32>
    %572 = arith.cmpi eq, %514, %571 : vector<16x128xi32>
    %c3_276 = arith.constant 3 : index
    %c10_277 = arith.constant 10 : index
    %573 = memref.load %arg3[%c3_276, %c10_277] : memref<4x32xf32, #tpu.memory_space<smem>>
    %574 = vector.broadcast %573 : f32 to vector<16x128xf32>
    %575 = arith.select %572, %574, %570 : vector<16x128xi1>, vector<16x128xf32>
    %c11_i32_278 = arith.constant 11 : i32
    %576 = vector.broadcast %c11_i32_278 : i32 to vector<16x128xi32>
    %577 = arith.cmpi eq, %514, %576 : vector<16x128xi32>
    %c3_279 = arith.constant 3 : index
    %c11_280 = arith.constant 11 : index
    %578 = memref.load %arg3[%c3_279, %c11_280] : memref<4x32xf32, #tpu.memory_space<smem>>
    %579 = vector.broadcast %578 : f32 to vector<16x128xf32>
    %580 = arith.select %577, %579, %575 : vector<16x128xi1>, vector<16x128xf32>
    %c12_i32_281 = arith.constant 12 : i32
    %581 = vector.broadcast %c12_i32_281 : i32 to vector<16x128xi32>
    %582 = arith.cmpi eq, %514, %581 : vector<16x128xi32>
    %c3_282 = arith.constant 3 : index
    %c12_283 = arith.constant 12 : index
    %583 = memref.load %arg3[%c3_282, %c12_283] : memref<4x32xf32, #tpu.memory_space<smem>>
    %584 = vector.broadcast %583 : f32 to vector<16x128xf32>
    %585 = arith.select %582, %584, %580 : vector<16x128xi1>, vector<16x128xf32>
    %c13_i32_284 = arith.constant 13 : i32
    %586 = vector.broadcast %c13_i32_284 : i32 to vector<16x128xi32>
    %587 = arith.cmpi eq, %514, %586 : vector<16x128xi32>
    %c3_285 = arith.constant 3 : index
    %c13_286 = arith.constant 13 : index
    %588 = memref.load %arg3[%c3_285, %c13_286] : memref<4x32xf32, #tpu.memory_space<smem>>
    %589 = vector.broadcast %588 : f32 to vector<16x128xf32>
    %590 = arith.select %587, %589, %585 : vector<16x128xi1>, vector<16x128xf32>
    %c14_i32_287 = arith.constant 14 : i32
    %591 = vector.broadcast %c14_i32_287 : i32 to vector<16x128xi32>
    %592 = arith.cmpi eq, %514, %591 : vector<16x128xi32>
    %c3_288 = arith.constant 3 : index
    %c14_289 = arith.constant 14 : index
    %593 = memref.load %arg3[%c3_288, %c14_289] : memref<4x32xf32, #tpu.memory_space<smem>>
    %594 = vector.broadcast %593 : f32 to vector<16x128xf32>
    %595 = arith.select %592, %594, %590 : vector<16x128xi1>, vector<16x128xf32>
    %c15_i32_290 = arith.constant 15 : i32
    %596 = vector.broadcast %c15_i32_290 : i32 to vector<16x128xi32>
    %597 = arith.cmpi eq, %514, %596 : vector<16x128xi32>
    %c3_291 = arith.constant 3 : index
    %c15_292 = arith.constant 15 : index
    %598 = memref.load %arg3[%c3_291, %c15_292] : memref<4x32xf32, #tpu.memory_space<smem>>
    %599 = vector.broadcast %598 : f32 to vector<16x128xf32>
    %600 = arith.select %597, %599, %595 : vector<16x128xi1>, vector<16x128xf32>
    %c16_i32_293 = arith.constant 16 : i32
    %601 = vector.broadcast %c16_i32_293 : i32 to vector<16x128xi32>
    %602 = arith.cmpi eq, %514, %601 : vector<16x128xi32>
    %c3_294 = arith.constant 3 : index
    %c16_295 = arith.constant 16 : index
    %603 = memref.load %arg3[%c3_294, %c16_295] : memref<4x32xf32, #tpu.memory_space<smem>>
    %604 = vector.broadcast %603 : f32 to vector<16x128xf32>
    %605 = arith.select %602, %604, %600 : vector<16x128xi1>, vector<16x128xf32>
    %c17_i32_296 = arith.constant 17 : i32
    %606 = vector.broadcast %c17_i32_296 : i32 to vector<16x128xi32>
    %607 = arith.cmpi eq, %514, %606 : vector<16x128xi32>
    %c3_297 = arith.constant 3 : index
    %c17_298 = arith.constant 17 : index
    %608 = memref.load %arg3[%c3_297, %c17_298] : memref<4x32xf32, #tpu.memory_space<smem>>
    %609 = vector.broadcast %608 : f32 to vector<16x128xf32>
    %610 = arith.select %607, %609, %605 : vector<16x128xi1>, vector<16x128xf32>
    %c18_i32_299 = arith.constant 18 : i32
    %611 = vector.broadcast %c18_i32_299 : i32 to vector<16x128xi32>
    %612 = arith.cmpi eq, %514, %611 : vector<16x128xi32>
    %c3_300 = arith.constant 3 : index
    %c18_301 = arith.constant 18 : index
    %613 = memref.load %arg3[%c3_300, %c18_301] : memref<4x32xf32, #tpu.memory_space<smem>>
    %614 = vector.broadcast %613 : f32 to vector<16x128xf32>
    %615 = arith.select %612, %614, %610 : vector<16x128xi1>, vector<16x128xf32>
    %c19_i32_302 = arith.constant 19 : i32
    %616 = vector.broadcast %c19_i32_302 : i32 to vector<16x128xi32>
    %617 = arith.cmpi eq, %514, %616 : vector<16x128xi32>
    %c3_303 = arith.constant 3 : index
    %c19_304 = arith.constant 19 : index
    %618 = memref.load %arg3[%c3_303, %c19_304] : memref<4x32xf32, #tpu.memory_space<smem>>
    %619 = vector.broadcast %618 : f32 to vector<16x128xf32>
    %620 = arith.select %617, %619, %615 : vector<16x128xi1>, vector<16x128xf32>
    %c20_i32_305 = arith.constant 20 : i32
    %621 = vector.broadcast %c20_i32_305 : i32 to vector<16x128xi32>
    %622 = arith.cmpi eq, %514, %621 : vector<16x128xi32>
    %c3_306 = arith.constant 3 : index
    %c20_307 = arith.constant 20 : index
    %623 = memref.load %arg3[%c3_306, %c20_307] : memref<4x32xf32, #tpu.memory_space<smem>>
    %624 = vector.broadcast %623 : f32 to vector<16x128xf32>
    %625 = arith.select %622, %624, %620 : vector<16x128xi1>, vector<16x128xf32>
    %c21_i32_308 = arith.constant 21 : i32
    %626 = vector.broadcast %c21_i32_308 : i32 to vector<16x128xi32>
    %627 = arith.cmpi eq, %514, %626 : vector<16x128xi32>
    %c3_309 = arith.constant 3 : index
    %c21_310 = arith.constant 21 : index
    %628 = memref.load %arg3[%c3_309, %c21_310] : memref<4x32xf32, #tpu.memory_space<smem>>
    %629 = vector.broadcast %628 : f32 to vector<16x128xf32>
    %630 = arith.select %627, %629, %625 : vector<16x128xi1>, vector<16x128xf32>
    %c22_i32_311 = arith.constant 22 : i32
    %631 = vector.broadcast %c22_i32_311 : i32 to vector<16x128xi32>
    %632 = arith.cmpi eq, %514, %631 : vector<16x128xi32>
    %c3_312 = arith.constant 3 : index
    %c22_313 = arith.constant 22 : index
    %633 = memref.load %arg3[%c3_312, %c22_313] : memref<4x32xf32, #tpu.memory_space<smem>>
    %634 = vector.broadcast %633 : f32 to vector<16x128xf32>
    %635 = arith.select %632, %634, %630 : vector<16x128xi1>, vector<16x128xf32>
    %c23_i32_314 = arith.constant 23 : i32
    %636 = vector.broadcast %c23_i32_314 : i32 to vector<16x128xi32>
    %637 = arith.cmpi eq, %514, %636 : vector<16x128xi32>
    %c3_315 = arith.constant 3 : index
    %c23_316 = arith.constant 23 : index
    %638 = memref.load %arg3[%c3_315, %c23_316] : memref<4x32xf32, #tpu.memory_space<smem>>
    %639 = vector.broadcast %638 : f32 to vector<16x128xf32>
    %640 = arith.select %637, %639, %635 : vector<16x128xi1>, vector<16x128xf32>
    %c24_i32_317 = arith.constant 24 : i32
    %641 = vector.broadcast %c24_i32_317 : i32 to vector<16x128xi32>
    %642 = arith.cmpi eq, %514, %641 : vector<16x128xi32>
    %c3_318 = arith.constant 3 : index
    %c24_319 = arith.constant 24 : index
    %643 = memref.load %arg3[%c3_318, %c24_319] : memref<4x32xf32, #tpu.memory_space<smem>>
    %644 = vector.broadcast %643 : f32 to vector<16x128xf32>
    %645 = arith.select %642, %644, %640 : vector<16x128xi1>, vector<16x128xf32>
    %c25_i32_320 = arith.constant 25 : i32
    %646 = vector.broadcast %c25_i32_320 : i32 to vector<16x128xi32>
    %647 = arith.cmpi eq, %514, %646 : vector<16x128xi32>
    %c3_321 = arith.constant 3 : index
    %c25_322 = arith.constant 25 : index
    %648 = memref.load %arg3[%c3_321, %c25_322] : memref<4x32xf32, #tpu.memory_space<smem>>
    %649 = vector.broadcast %648 : f32 to vector<16x128xf32>
    %650 = arith.select %647, %649, %645 : vector<16x128xi1>, vector<16x128xf32>
    %c26_i32_323 = arith.constant 26 : i32
    %651 = vector.broadcast %c26_i32_323 : i32 to vector<16x128xi32>
    %652 = arith.cmpi eq, %514, %651 : vector<16x128xi32>
    %c3_324 = arith.constant 3 : index
    %c26_325 = arith.constant 26 : index
    %653 = memref.load %arg3[%c3_324, %c26_325] : memref<4x32xf32, #tpu.memory_space<smem>>
    %654 = vector.broadcast %653 : f32 to vector<16x128xf32>
    %655 = arith.select %652, %654, %650 : vector<16x128xi1>, vector<16x128xf32>
    %c27_i32_326 = arith.constant 27 : i32
    %656 = vector.broadcast %c27_i32_326 : i32 to vector<16x128xi32>
    %657 = arith.cmpi eq, %514, %656 : vector<16x128xi32>
    %c3_327 = arith.constant 3 : index
    %c27_328 = arith.constant 27 : index
    %658 = memref.load %arg3[%c3_327, %c27_328] : memref<4x32xf32, #tpu.memory_space<smem>>
    %659 = vector.broadcast %658 : f32 to vector<16x128xf32>
    %660 = arith.select %657, %659, %655 : vector<16x128xi1>, vector<16x128xf32>
    %c28_i32_329 = arith.constant 28 : i32
    %661 = vector.broadcast %c28_i32_329 : i32 to vector<16x128xi32>
    %662 = arith.cmpi eq, %514, %661 : vector<16x128xi32>
    %c3_330 = arith.constant 3 : index
    %c28_331 = arith.constant 28 : index
    %663 = memref.load %arg3[%c3_330, %c28_331] : memref<4x32xf32, #tpu.memory_space<smem>>
    %664 = vector.broadcast %663 : f32 to vector<16x128xf32>
    %665 = arith.select %662, %664, %660 : vector<16x128xi1>, vector<16x128xf32>
    %c29_i32_332 = arith.constant 29 : i32
    %666 = vector.broadcast %c29_i32_332 : i32 to vector<16x128xi32>
    %667 = arith.cmpi eq, %514, %666 : vector<16x128xi32>
    %c3_333 = arith.constant 3 : index
    %c29_334 = arith.constant 29 : index
    %668 = memref.load %arg3[%c3_333, %c29_334] : memref<4x32xf32, #tpu.memory_space<smem>>
    %669 = vector.broadcast %668 : f32 to vector<16x128xf32>
    %670 = arith.select %667, %669, %665 : vector<16x128xi1>, vector<16x128xf32>
    %c30_i32_335 = arith.constant 30 : i32
    %671 = vector.broadcast %c30_i32_335 : i32 to vector<16x128xi32>
    %672 = arith.cmpi eq, %514, %671 : vector<16x128xi32>
    %c3_336 = arith.constant 3 : index
    %c30_337 = arith.constant 30 : index
    %673 = memref.load %arg3[%c3_336, %c30_337] : memref<4x32xf32, #tpu.memory_space<smem>>
    %674 = vector.broadcast %673 : f32 to vector<16x128xf32>
    %675 = arith.select %672, %674, %670 : vector<16x128xi1>, vector<16x128xf32>
    %c31_i32_338 = arith.constant 31 : i32
    %676 = vector.broadcast %c31_i32_338 : i32 to vector<16x128xi32>
    %677 = arith.cmpi eq, %514, %676 : vector<16x128xi32>
    %c3_339 = arith.constant 3 : index
    %c31_340 = arith.constant 31 : index
    %678 = memref.load %arg3[%c3_339, %c31_340] : memref<4x32xf32, #tpu.memory_space<smem>>
    %679 = vector.broadcast %678 : f32 to vector<16x128xf32>
    %680 = arith.select %677, %679, %675 : vector<16x128xi1>, vector<16x128xf32>
    %681 = arith.addf %511, %680 : vector<16x128xf32>
    %cst_341 = arith.constant 0.000000e+00 : f32
    %682 = vector.broadcast %cst_341 : f32 to vector<16x128xf32>
    %cst_342 = arith.constant 1.000000e+00 : f32
    %683 = vector.broadcast %cst_342 : f32 to vector<16x128xf32>
    %684 = arith.cmpf oeq, %519, %683 : vector<16x128xf32>
    %cst_343 = arith.constant 1.000000e+00 : f32
    %685 = vector.broadcast %cst_343 : f32 to vector<16x128xf32>
    %686 = arith.select %684, %685, %682 : vector<16x128xi1>, vector<16x128xf32>
    %cst_344 = arith.constant 2.000000e+00 : f32
    %687 = vector.broadcast %cst_344 : f32 to vector<16x128xf32>
    %688 = arith.cmpf oeq, %519, %687 : vector<16x128xf32>
    %cst_345 = arith.constant 5.000000e-01 : f32
    %689 = vector.broadcast %cst_345 : f32 to vector<16x128xf32>
    %690 = arith.select %688, %689, %686 : vector<16x128xi1>, vector<16x128xf32>
    %cst_346 = arith.constant 3.000000e+00 : f32
    %691 = vector.broadcast %cst_346 : f32 to vector<16x128xf32>
    %692 = arith.cmpf oeq, %519, %691 : vector<16x128xf32>
    %cst_347 = arith.constant 0.333333343 : f32
    %693 = vector.broadcast %cst_347 : f32 to vector<16x128xf32>
    %694 = arith.select %692, %693, %690 : vector<16x128xi1>, vector<16x128xf32>
    %cst_348 = arith.constant 4.000000e+00 : f32
    %695 = vector.broadcast %cst_348 : f32 to vector<16x128xf32>
    %696 = arith.cmpf oeq, %519, %695 : vector<16x128xf32>
    %cst_349 = arith.constant 2.500000e-01 : f32
    %697 = vector.broadcast %cst_349 : f32 to vector<16x128xf32>
    %698 = arith.select %696, %697, %694 : vector<16x128xi1>, vector<16x128xf32>
    %699 = arith.mulf %681, %698 : vector<16x128xf32>
    %c0_350 = arith.constant 0 : index
    %c0_351 = arith.constant 0 : index
    %700 = vector.load %arg4[%c0_350, %c0_351] : memref<16x128xf32, #tpu.memory_space<vmem>>, vector<16x128xf32>
    tpu.vector_store %arg4[%c0_350, %c0_351], %699 {strides = array<i32>} : memref<16x128xf32, #tpu.memory_space<vmem>>, vector<16x128xf32>,
    return
  }
  func.func @transform_0(%arg0: i32, %arg1: i32) -> (i32, i32, i32) {
    %c0_i32 = arith.constant 0 : i32
    %c0_i32_0 = arith.constant 0 : i32
    return %c0_i32, %arg0, %arg1 : i32, i32, i32
  }
  func.func @transform_1(%arg0: i32, %arg1: i32) -> (i32, i32) {
    %c0_i32 = arith.constant 0 : i32
    %c0_i32_0 = arith.constant 0 : i32
    %c0_i32_1 = arith.constant 0 : i32
    return %c0_i32, %c0_i32_0 : i32, i32
  }
  func.func @transform_2(%arg0: i32, %arg1: i32) -> (i32, i32) {
    %c0_i32 = arith.constant 0 : i32
    return %arg0, %arg1 : i32, i32
  }
}

</mosaic_0001>

<llo_original>
// kernel: tpu_custom_call.1
$region0: #{tpu_custom_call.1}
  #allocation0 [shape = 'u32[]', space=smem, size = 0x4, offset = 0x4, fixed_abs, tag = 'smem constant byte address 0x4 - core index']
  #allocation1 [shape = 'u32[72,128]{1,0:T(1,128)}', space=vmem, size = 0x9000, scoped, tag = 'internal scratch']
  %s0 = inlined_call_operand.hbm [shape: s16[4,16,128], index: 0, kind: input, shape index: {}]
  %s1 = inlined_call_operand.hbm [shape: f32[4,32], index: 1, kind: input, shape index: {}]
  %s2 = inlined_call_operand.hbm [shape: f32[16,128], index: 2, kind: output, shape index: {}]
  %s3 = sld [smem:[#allocation0]]
  $region26: #{tpu_custom_call.1} parent=0
    _
  %s5 = ssub.s32 1, %s3
  %s6 = scalar_select 0, %s5, %s3
  $region1: #{tpu_custom_call.1} parent=0
    #allocation2 [shape = 'u8[16384]{0}', space=vmem, size = 0x4000, scoped, tag = 'input window, operand 0, single buffered']
    #allocation3 [shape = 's32[1]{0}', space=sflag, size = 0x4, scoped, tag = 'scoped memory for tpu_custom_call.1']
    #allocation4 [shape = 's32[1]{0}', space=sflag, size = 0x4, scoped, tag = 'scoped memory for tpu_custom_call.1']
    #allocation5 [shape = 's32[1]{0}', space=sflag, size = 0x4, scoped, tag = 'scoped memory for tpu_custom_call.1']
    #allocation6 [shape = 'u8[2048]{0}', space=smem, size = 0x800, scoped, tag = 'input window, operand 1, single buffered']
    #allocation7 [shape = 'u8[8192]{0}', space=vmem, size = 0x2000, scoped, tag = 'output window, operand 0, single buffered']
    %7 = vsyncpa [#allocation3], 0
    %8 = vsyncpa [#allocation5], 0
    %9 = vsyncpa [#allocation4], 0
    // Predicated region
    $region2: #{tpu_custom_call.1} parent=1 // pred_check
      _
    $region3: #{tpu_custom_call.1} parent=1 // pred_check_branch
      %11 = sbr.rel (0) target = $region5
    $region4: #{tpu_custom_call.1} parent=1 // pred_region
      %13 = vsyncadd [#allocation3], 0
      %s14 = sshll.u32 %s0, 4
      %s15 = int_to_ptr.hbm [resolvable:$true] %s14
      %s16 = sshll.u32 [#allocation2], 4
      %s17 = int_to_ptr.vmem [resolvable:$true] %s16
      %22 = dma.hbm_to_vmem [thread:$0]  %s15, 512, %s17, [#allocation3], 64, 64, 4
    $region5: #{tpu_custom_call.1} parent=1 // pred_fallthru
      _
    // Predicated region
    $region6: #{tpu_custom_call.1} parent=1 // pred_check
      _
    $region7: #{tpu_custom_call.1} parent=1 // pred_check_branch
      %24 = sbr.rel (0) target = $region9
    $region8: #{tpu_custom_call.1} parent=1 // pred_region
      %26 = vsyncadd [#allocation5], 0
      %s28 = sshll.u32 %s1, 4
      %s29 = int_to_ptr.hbm [resolvable:$true] %s28
      %31 = dma.hbm_to_smem %s29, 64, [#allocation6], [#allocation5]
    $region9: #{tpu_custom_call.1} parent=1 // pred_fallthru
      _
    // Predicated region
    $region10: #{tpu_custom_call.1} parent=1 // pred_check
      _
    $region11: #{tpu_custom_call.1} parent=1 // pred_check_branch
      %33 = sbr.rel (0) target = $region13
    $region12: #{tpu_custom_call.1} parent=1 // pred_region
      %35 = dma.done [#allocation3], 512
    $region13: #{tpu_custom_call.1} parent=1 // pred_fallthru
      _
    // Predicated region
    $region14: #{tpu_custom_call.1} parent=1 // pred_check
      _
    $region15: #{tpu_custom_call.1} parent=1 // pred_check_branch
      %37 = sbr.rel (0) target = $region17
    $region16: #{tpu_custom_call.1} parent=1 // pred_region
      %39 = dma.done [#allocation5], 64
    $region17: #{tpu_custom_call.1} parent=1 // pred_fallthru
      _
    %40 = sfence
    %v41 = vld [vmem:[#allocation2] sm:$0xf]
    %v42 = vld [vmem:[#allocation2 + $0x4] sm:$0xf]
    %v43 = vunpack.c.l.b16 %v41
    %v44 = vunpack.c.l.b16 %v42
    %vm45 = vcmp.ge.s32.totalorder %v43, 0
    %vm46 = vcmp.ge.s32.totalorder %v44, 0
    %v47 = vsel %vm45, 1, 0
    %v48 = vsel %vm46, 1, 0
    %v49 = vcvt.s32.f32 %v47
    %v50 = vcvt.s32.f32 %v48
    %v51 = vadd.f32 %v49, 0.0
    %v52 = vadd.f32 %v50, 0.0
    %vm53 = vcmp.eq.s32.totalorder %v43, 0
    %vm54 = vcmp.eq.s32.totalorder %v44, 0
    %s55 = sld [smem:[#allocation6]]
    %v56 = vstv %s55
    %v57 = vsel %vm53, %v56, 0.0
    %v58 = vsel %vm54, %v56, 0.0
    %vm59 = vcmp.eq.s32.totalorder %v43, 1
    %vm60 = vcmp.eq.s32.totalorder %v44, 1
    %s61 = sld [smem:[#allocation6 + $0x1]]
    %v62 = vstv %s61
    %v63 = vsel %vm59, %v62, %v57
    %v64 = vsel %vm60, %v62, %v58
    %vm65 = vcmp.eq.s32.totalorder %v43, 2
    %vm66 = vcmp.eq.s32.totalorder %v44, 2
    %s67 = sld [smem:[#allocation6 + $0x2]]
    %v68 = vstv %s67
    %v69 = vsel %vm65, %v68, %v63
    %v70 = vsel %vm66, %v68, %v64
    %vm71 = vcmp.eq.s32.totalorder %v43, 3
    %vm72 = vcmp.eq.s32.totalorder %v44, 3
    %s73 = sld [smem:[#allocation6 + $0x3]]
    %v74 = vstv %s73
    %v75 = vsel %vm71, %v74, %v69
    %v76 = vsel %vm72, %v74, %v70
    %vm77 = vcmp.eq.s32.totalorder %v43, 4
    %vm78 = vcmp.eq.s32.totalorder %v44, 4
    %s79 = sld [smem:[#allocation6 + $0x4]]
    %v80 = vstv %s79
    %v81 = vsel %vm77, %v80, %v75
    %v82 = vsel %vm78, %v80, %v76
    %vm83 = vcmp.eq.s32.totalorder %v43, 5
    %vm84 = vcmp.eq.s32.totalorder %v44, 5
    %s85 = sld [smem:[#allocation6 + $0x5]]
    %v86 = vstv %s85
    %v87 = vsel %vm83, %v86, %v81
    %v88 = vsel %vm84, %v86, %v82
    %vm89 = vcmp.eq.s32.totalorder %v43, 6
    %vm90 = vcmp.eq.s32.totalorder %v44, 6
    %s91 = sld [smem:[#allocation6 + $0x6]]
    %v92 = vstv %s91
    %v93 = vsel %vm89, %v92, %v87
    %v94 = vsel %vm90, %v92, %v88
    %vm95 = vcmp.eq.s32.totalorder %v43, 7
    %vm96 = vcmp.eq.s32.totalorder %v44, 7
    %s97 = sld [smem:[#allocation6 + $0x7]]
    %v98 = vstv %s97
    %v99 = vsel %vm95, %v98, %v93
    %v100 = vsel %vm96, %v98, %v94
    %vm101 = vcmp.eq.s32.totalorder %v43, 8
    %vm102 = vcmp.eq.s32.totalorder %v44, 8
    %s103 = sld [smem:[#allocation6 + $0x8]]
    %v104 = vstv %s103
    %v105 = vsel %vm101, %v104, %v99
    %v106 = vsel %vm102, %v104, %v100
    %vm107 = vcmp.eq.s32.totalorder %v43, 9
    %vm108 = vcmp.eq.s32.totalorder %v44, 9
    %s109 = sld [smem:[#allocation6 + $0x9]]
    %v110 = vstv %s109
    %v111 = vsel %vm107, %v110, %v105
    %v112 = vsel %vm108, %v110, %v106
    %vm113 = vcmp.eq.s32.totalorder %v43, 10
    %vm114 = vcmp.eq.s32.totalorder %v44, 10
    %s115 = sld [smem:[#allocation6 + $0xa]]
    %v116 = vstv %s115
    %v117 = vsel %vm113, %v116, %v111
    %v118 = vsel %vm114, %v116, %v112
    %vm119 = vcmp.eq.s32.totalorder %v43, 11
    %vm120 = vcmp.eq.s32.totalorder %v44, 11
    %s121 = sld [smem:[#allocation6 + $0xb]]
    %v122 = vstv %s121
    %v123 = vsel %vm119, %v122, %v117
    %v124 = vsel %vm120, %v122, %v118
    %vm125 = vcmp.eq.s32.totalorder %v43, 12
    %vm126 = vcmp.eq.s32.totalorder %v44, 12
    %s127 = sld [smem:[#allocation6 + $0xc]]
    %v128 = vstv %s127
    %v129 = vsel %vm125, %v128, %v123
    %v130 = vsel %vm126, %v128, %v124
    %vm131 = vcmp.eq.s32.totalorder %v43, 13
    %vm132 = vcmp.eq.s32.totalorder %v44, 13
    %s133 = sld [smem:[#allocation6 + $0xd]]
    %v134 = vstv %s133
    %v135 = vsel %vm131, %v134, %v129
    %v136 = vsel %vm132, %v134, %v130
    %vm137 = vcmp.eq.s32.totalorder %v43, 14
    %vm138 = vcmp.eq.s32.totalorder %v44, 14
    %s139 = sld [smem:[#allocation6 + $0xe]]
    %v140 = vstv %s139
    %v141 = vsel %vm137, %v140, %v135
    %v142 = vsel %vm138, %v140, %v136
    %vm143 = vcmp.eq.s32.totalorder %v43, 15
    %vm144 = vcmp.eq.s32.totalorder %v44, 15
    %s145 = sld [smem:[#allocation6 + $0xf]]
    %v146 = vstv %s145
    %v147 = vsel %vm143, %v146, %v141
    %v148 = vsel %vm144, %v146, %v142
    %vm149 = vcmp.eq.s32.totalorder %v43, 16
    %vm150 = vcmp.eq.s32.totalorder %v44, 16
    %s151 = sld [smem:[#allocation6 + $0x10]]
    %v152 = vstv %s151
    %v153 = vsel %vm149, %v152, %v147
    %v154 = vsel %vm150, %v152, %v148
    %vm155 = vcmp.eq.s32.totalorder %v43, 17
    %vm156 = vcmp.eq.s32.totalorder %v44, 17
    %s157 = sld [smem:[#allocation6 + $0x11]]
    %v158 = vstv %s157
    %v159 = vsel %vm155, %v158, %v153
    %v160 = vsel %vm156, %v158, %v154
    %vm161 = vcmp.eq.s32.totalorder %v43, 18
    %vm162 = vcmp.eq.s32.totalorder %v44, 18
    %s163 = sld [smem:[#allocation6 + $0x12]]
    %v164 = vstv %s163
    %v165 = vsel %vm161, %v164, %v159
    %v166 = vsel %vm162, %v164, %v160
    %vm167 = vcmp.eq.s32.totalorder %v43, 19
    %vm168 = vcmp.eq.s32.totalorder %v44, 19
    %s169 = sld [smem:[#allocation6 + $0x13]]
    %v170 = vstv %s169
    %v171 = vsel %vm167, %v170, %v165
    %v172 = vsel %vm168, %v170, %v166
    %vm173 = vcmp.eq.s32.totalorder %v43, 20
    %vm174 = vcmp.eq.s32.totalorder %v44, 20
    %s175 = sld [smem:[#allocation6 + $0x14]]
    %v176 = vstv %s175
    %v177 = vsel %vm173, %v176, %v171
    %v178 = vsel %vm174, %v176, %v172
    %vm179 = vcmp.eq.s32.totalorder %v43, 21
    %vm180 = vcmp.eq.s32.totalorder %v44, 21
    %s181 = sld [smem:[#allocation6 + $0x15]]
    %v182 = vstv %s181
    %v183 = vsel %vm179, %v182, %v177
    %v184 = vsel %vm180, %v182, %v178
    %vm185 = vcmp.eq.s32.totalorder %v43, 22
    %vm186 = vcmp.eq.s32.totalorder %v44, 22
    %s187 = sld [smem:[#allocation6 + $0x16]]
    %v188 = vstv %s187
    %v189 = vsel %vm185, %v188, %v183
    %v190 = vsel %vm186, %v188, %v184
    %vm191 = vcmp.eq.s32.totalorder %v43, 23
    %vm192 = vcmp.eq.s32.totalorder %v44, 23
    %s193 = sld [smem:[#allocation6 + $0x17]]
    %v194 = vstv %s193
    %v195 = vsel %vm191, %v194, %v189
    %v196 = vsel %vm192, %v194, %v190
    %vm197 = vcmp.eq.s32.totalorder %v43, 24
    %vm198 = vcmp.eq.s32.totalorder %v44, 24
    %s199 = sld [smem:[#allocation6 + $0x18]]
    %v200 = vstv %s199
    %v201 = vsel %vm197, %v200, %v195
    %v202 = vsel %vm198, %v200, %v196
    %vm203 = vcmp.eq.s32.totalorder %v43, 25
    %vm204 = vcmp.eq.s32.totalorder %v44, 25
    %s205 = sld [smem:[#allocation6 + $0x19]]
    %v206 = vstv %s205
    %v207 = vsel %vm203, %v206, %v201
    %v208 = vsel %vm204, %v206, %v202
    %vm209 = vcmp.eq.s32.totalorder %v43, 26
    %vm210 = vcmp.eq.s32.totalorder %v44, 26
    %s211 = sld [smem:[#allocation6 + $0x1a]]
    %v212 = vstv %s211
    %v213 = vsel %vm209, %v212, %v207
    %v214 = vsel %vm210, %v212, %v208
    %vm215 = vcmp.eq.s32.totalorder %v43, 27
    %vm216 = vcmp.eq.s32.totalorder %v44, 27
    %s217 = sld [smem:[#allocation6 + $0x1b]]
    %v218 = vstv %s217
    %v219 = vsel %vm215, %v218, %v213
    %v220 = vsel %vm216, %v218, %v214
    %vm221 = vcmp.eq.s32.totalorder %v43, 28
    %vm222 = vcmp.eq.s32.totalorder %v44, 28
    %s223 = sld [smem:[#allocation6 + $0x1c]]
    %v224 = vstv %s223
    %v225 = vsel %vm221, %v224, %v219
    %v226 = vsel %vm222, %v224, %v220
    %vm227 = vcmp.eq.s32.totalorder %v43, 29
    %vm228 = vcmp.eq.s32.totalorder %v44, 29
    %s229 = sld [smem:[#allocation6 + $0x1d]]
    %v230 = vstv %s229
    %v231 = vsel %vm227, %v230, %v225
    %v232 = vsel %vm228, %v230, %v226
    %vm233 = vcmp.eq.s32.totalorder %v43, 30
    %vm234 = vcmp.eq.s32.totalorder %v44, 30
    %s235 = sld [smem:[#allocation6 + $0x1e]]
    %v236 = vstv %s235
    %v237 = vsel %vm233, %v236, %v231
    %v238 = vsel %vm234, %v236, %v232
    %vm239 = vcmp.eq.s32.totalorder %v43, 31
    %vm240 = vcmp.eq.s32.totalorder %v44, 31
    %s241 = sld [smem:[#allocation6 + $0x1f]]
    %v242 = vstv %s241
    %v243 = vsel %vm239, %v242, %v237
    %v244 = vsel %vm240, %v242, %v238
    %v245 = vadd.f32 %v243, 0.0
    %v246 = vadd.f32 %v244, 0.0
    %s247 = scalar_lea.vmem [#allocation2], 8
    %v248 = vld [vmem:[%s247] sm:$0xf]
    %v249 = vld [vmem:[%s247 + $0x4] sm:$0xf]
    %v250 = vunpack.c.l.b16 %v248
    %v251 = vunpack.c.l.b16 %v249
    %vm252 = vcmp.ge.s32.totalorder %v250, 0
    %vm253 = vcmp.ge.s32.totalorder %v251, 0
    %v254 = vsel %vm252, 1, 0
    %v255 = vsel %vm253, 1, 0
    %v256 = vcvt.s32.f32 %v254
    %v257 = vcvt.s32.f32 %v255
    %v258 = vadd.f32 %v51, %v256
    %v259 = vadd.f32 %v52, %v257
    %vm260 = vcmp.eq.s32.totalorder %v250, 0
    %vm261 = vcmp.eq.s32.totalorder %v251, 0
    %s262 = sld [smem:[#allocation6 + $0x80]]
    %v263 = vstv %s262
    %v264 = vsel %vm260, %v263, 0.0
    %v265 = vsel %vm261, %v263, 0.0
    %vm266 = vcmp.eq.s32.totalorder %v250, 1
    %vm267 = vcmp.eq.s32.totalorder %v251, 1
    %s268 = sld [smem:[#allocation6 + $0x81]]
    %v269 = vstv %s268
    %v270 = vsel %vm266, %v269, %v264
    %v271 = vsel %vm267, %v269, %v265
    %vm272 = vcmp.eq.s32.totalorder %v250, 2
    %vm273 = vcmp.eq.s32.totalorder %v251, 2
    %s274 = sld [smem:[#allocation6 + $0x82]]
    %v275 = vstv %s274
    %v276 = vsel %vm272, %v275, %v270
    %v277 = vsel %vm273, %v275, %v271
    %vm278 = vcmp.eq.s32.totalorder %v250, 3
    %vm279 = vcmp.eq.s32.totalorder %v251, 3
    %s280 = sld [smem:[#allocation6 + $0x83]]
    %v281 = vstv %s280
    %v282 = vsel %vm278, %v281, %v276
    %v283 = vsel %vm279, %v281, %v277
    %vm284 = vcmp.eq.s32.totalorder %v250, 4
    %vm285 = vcmp.eq.s32.totalorder %v251, 4
    %s286 = sld [smem:[#allocation6 + $0x84]]
    %v287 = vstv %s286
    %v288 = vsel %vm284, %v287, %v282
    %v289 = vsel %vm285, %v287, %v283
    %vm290 = vcmp.eq.s32.totalorder %v250, 5
    %vm291 = vcmp.eq.s32.totalorder %v251, 5
    %s292 = sld [smem:[#allocation6 + $0x85]]
    %v293 = vstv %s292
    %v294 = vsel %vm290, %v293, %v288
    %v295 = vsel %vm291, %v293, %v289
    %vm296 = vcmp.eq.s32.totalorder %v250, 6
    %vm297 = vcmp.eq.s32.totalorder %v251, 6
    %s298 = sld [smem:[#allocation6 + $0x86]]
    %v299 = vstv %s298
    %v300 = vsel %vm296, %v299, %v294
    %v301 = vsel %vm297, %v299, %v295
    %vm302 = vcmp.eq.s32.totalorder %v250, 7
    %vm303 = vcmp.eq.s32.totalorder %v251, 7
    %s304 = sld [smem:[#allocation6 + $0x87]]
    %v305 = vstv %s304
    %v306 = vsel %vm302, %v305, %v300
    %v307 = vsel %vm303, %v305, %v301
    %vm308 = vcmp.eq.s32.totalorder %v250, 8
    %vm309 = vcmp.eq.s32.totalorder %v251, 8
    %s310 = sld [smem:[#allocation6 + $0x88]]
    %v311 = vstv %s310
    %v312 = vsel %vm308, %v311, %v306
    %v313 = vsel %vm309, %v311, %v307
    %vm314 = vcmp.eq.s32.totalorder %v250, 9
    %vm315 = vcmp.eq.s32.totalorder %v251, 9
    %s316 = sld [smem:[#allocation6 + $0x89]]
    %v317 = vstv %s316
    %v318 = vsel %vm314, %v317, %v312
    %v319 = vsel %vm315, %v317, %v313
    %vm320 = vcmp.eq.s32.totalorder %v250, 10
    %vm321 = vcmp.eq.s32.totalorder %v251, 10
    %s322 = sld [smem:[#allocation6 + $0x8a]]
    %v323 = vstv %s322
    %v324 = vsel %vm320, %v323, %v318
    %v325 = vsel %vm321, %v323, %v319
    %vm326 = vcmp.eq.s32.totalorder %v250, 11
    %vm327 = vcmp.eq.s32.totalorder %v251, 11
    %s328 = sld [smem:[#allocation6 + $0x8b]]
    %v329 = vstv %s328
    %v330 = vsel %vm326, %v329, %v324
    %v331 = vsel %vm327, %v329, %v325
    %vm332 = vcmp.eq.s32.totalorder %v250, 12
    %vm333 = vcmp.eq.s32.totalorder %v251, 12
    %s334 = sld [smem:[#allocation6 + $0x8c]]
    %v335 = vstv %s334
    %v336 = vsel %vm332, %v335, %v330
    %v337 = vsel %vm333, %v335, %v331
    %vm338 = vcmp.eq.s32.totalorder %v250, 13
    %vm339 = vcmp.eq.s32.totalorder %v251, 13
    %s340 = sld [smem:[#allocation6 + $0x8d]]
    %v341 = vstv %s340
    %v342 = vsel %vm338, %v341, %v336
    %v343 = vsel %vm339, %v341, %v337
    %vm344 = vcmp.eq.s32.totalorder %v250, 14
    %vm345 = vcmp.eq.s32.totalorder %v251, 14
    %s346 = sld [smem:[#allocation6 + $0x8e]]
    %v347 = vstv %s346
    %v348 = vsel %vm344, %v347, %v342
    %v349 = vsel %vm345, %v347, %v343
    %vm350 = vcmp.eq.s32.totalorder %v250, 15
    %vm351 = vcmp.eq.s32.totalorder %v251, 15
    %s352 = sld [smem:[#allocation6 + $0x8f]]
    %v353 = vstv %s352
    %v354 = vsel %vm350, %v353, %v348
    %v355 = vsel %vm351, %v353, %v349
    %vm356 = vcmp.eq.s32.totalorder %v250, 16
    %vm357 = vcmp.eq.s32.totalorder %v251, 16
    %s358 = sld [smem:[#allocation6 + $0x90]]
    %v359 = vstv %s358
    %v360 = vsel %vm356, %v359, %v354
    %v361 = vsel %vm357, %v359, %v355
    %vm362 = vcmp.eq.s32.totalorder %v250, 17
    %vm363 = vcmp.eq.s32.totalorder %v251, 17
    %s364 = sld [smem:[#allocation6 + $0x91]]
    %v365 = vstv %s364
    %v366 = vsel %vm362, %v365, %v360
    %v367 = vsel %vm363, %v365, %v361
    %vm368 = vcmp.eq.s32.totalorder %v250, 18
    %vm369 = vcmp.eq.s32.totalorder %v251, 18
    %s370 = sld [smem:[#allocation6 + $0x92]]
    %v371 = vstv %s370
    %v372 = vsel %vm368, %v371, %v366
    %v373 = vsel %vm369, %v371, %v367
    %vm374 = vcmp.eq.s32.totalorder %v250, 19
    %vm375 = vcmp.eq.s32.totalorder %v251, 19
    %s376 = sld [smem:[#allocation6 + $0x93]]
    %v377 = vstv %s376
    %v378 = vsel %vm374, %v377, %v372
    %v379 = vsel %vm375, %v377, %v373
    %vm380 = vcmp.eq.s32.totalorder %v250, 20
    %vm381 = vcmp.eq.s32.totalorder %v251, 20
    %s382 = sld [smem:[#allocation6 + $0x94]]
    %v383 = vstv %s382
    %v384 = vsel %vm380, %v383, %v378
    %v385 = vsel %vm381, %v383, %v379
    %vm386 = vcmp.eq.s32.totalorder %v250, 21
    %vm387 = vcmp.eq.s32.totalorder %v251, 21
    %s388 = sld [smem:[#allocation6 + $0x95]]
    %v389 = vstv %s388
    %v390 = vsel %vm386, %v389, %v384
    %v391 = vsel %vm387, %v389, %v385
    %vm392 = vcmp.eq.s32.totalorder %v250, 22
    %vm393 = vcmp.eq.s32.totalorder %v251, 22
    %s394 = sld [smem:[#allocation6 + $0x96]]
    %v395 = vstv %s394
    %v396 = vsel %vm392, %v395, %v390
    %v397 = vsel %vm393, %v395, %v391
    %vm398 = vcmp.eq.s32.totalorder %v250, 23
    %vm399 = vcmp.eq.s32.totalorder %v251, 23
    %s400 = sld [smem:[#allocation6 + $0x97]]
    %v401 = vstv %s400
    %v402 = vsel %vm398, %v401, %v396
    %v403 = vsel %vm399, %v401, %v397
    %vm404 = vcmp.eq.s32.totalorder %v250, 24
    %vm405 = vcmp.eq.s32.totalorder %v251, 24
    %s406 = sld [smem:[#allocation6 + $0x98]]
    %v407 = vstv %s406
    %v408 = vsel %vm404, %v407, %v402
    %v409 = vsel %vm405, %v407, %v403
    %vm410 = vcmp.eq.s32.totalorder %v250, 25
    %vm411 = vcmp.eq.s32.totalorder %v251, 25
    %s412 = sld [smem:[#allocation6 + $0x99]]
    %v413 = vstv %s412
    %v414 = vsel %vm410, %v413, %v408
    %v415 = vsel %vm411, %v413, %v409
    %vm416 = vcmp.eq.s32.totalorder %v250, 26
    %vm417 = vcmp.eq.s32.totalorder %v251, 26
    %s418 = sld [smem:[#allocation6 + $0x9a]]
    %v419 = vstv %s418
    %v420 = vsel %vm416, %v419, %v414
    %v421 = vsel %vm417, %v419, %v415
    %vm422 = vcmp.eq.s32.totalorder %v250, 27
    %vm423 = vcmp.eq.s32.totalorder %v251, 27
    %s424 = sld [smem:[#allocation6 + $0x9b]]
    %v425 = vstv %s424
    %v426 = vsel %vm422, %v425, %v420
    %v427 = vsel %vm423, %v425, %v421
    %vm428 = vcmp.eq.s32.totalorder %v250, 28
    %vm429 = vcmp.eq.s32.totalorder %v251, 28
    %s430 = sld [smem:[#allocation6 + $0x9c]]
    %v431 = vstv %s430
    %v432 = vsel %vm428, %v431, %v426
    %v433 = vsel %vm429, %v431, %v427
    %vm434 = vcmp.eq.s32.totalorder %v250, 29
    %vm435 = vcmp.eq.s32.totalorder %v251, 29
    %s436 = sld [smem:[#allocation6 + $0x9d]]
    %v437 = vstv %s436
    %v438 = vsel %vm434, %v437, %v432
    %v439 = vsel %vm435, %v437, %v433
    %vm440 = vcmp.eq.s32.totalorder %v250, 30
    %vm441 = vcmp.eq.s32.totalorder %v251, 30
    %s442 = sld [smem:[#allocation6 + $0x9e]]
    %v443 = vstv %s442
    %v444 = vsel %vm440, %v443, %v438
    %v445 = vsel %vm441, %v443, %v439
    %vm446 = vcmp.eq.s32.totalorder %v250, 31
    %vm447 = vcmp.eq.s32.totalorder %v251, 31
    %s448 = sld [smem:[#allocation6 + $0x9f]]
    %v449 = vstv %s448
    %v450 = vsel %vm446, %v449, %v444
    %v451 = vsel %vm447, %v449, %v445
    %v452 = vadd.f32 %v245, %v450
    %v453 = vadd.f32 %v246, %v451
    %s454 = scalar_lea.vmem [#allocation2], 16
    %v455 = vld [vmem:[%s454] sm:$0xf]
    %v456 = vld [vmem:[%s454 + $0x4] sm:$0xf]
    %v457 = vunpack.c.l.b16 %v455
    %v458 = vunpack.c.l.b16 %v456
    %vm459 = vcmp.ge.s32.totalorder %v457, 0
    %vm460 = vcmp.ge.s32.totalorder %v458, 0
    %v461 = vsel %vm459, 1, 0
    %v462 = vsel %vm460, 1, 0
    %v463 = vcvt.s32.f32 %v461
    %v464 = vcvt.s32.f32 %v462
    %v465 = vadd.f32 %v258, %v463
    %v466 = vadd.f32 %v259, %v464
    %vm467 = vcmp.eq.s32.totalorder %v457, 0
    %vm468 = vcmp.eq.s32.totalorder %v458, 0
    %s469 = sld [smem:[#allocation6 + $0x100]]
    %v470 = vstv %s469
    %v471 = vsel %vm467, %v470, 0.0
    %v472 = vsel %vm468, %v470, 0.0
    %vm473 = vcmp.eq.s32.totalorder %v457, 1
    %vm474 = vcmp.eq.s32.totalorder %v458, 1
    %s475 = sld [smem:[#allocation6 + $0x101]]
    %v476 = vstv %s475
    %v477 = vsel %vm473, %v476, %v471
    %v478 = vsel %vm474, %v476, %v472
    %vm479 = vcmp.eq.s32.totalorder %v457, 2
    %vm480 = vcmp.eq.s32.totalorder %v458, 2
    %s481 = sld [smem:[#allocation6 + $0x102]]
    %v482 = vstv %s481
    %v483 = vsel %vm479, %v482, %v477
    %v484 = vsel %vm480, %v482, %v478
    %vm485 = vcmp.eq.s32.totalorder %v457, 3
    %vm486 = vcmp.eq.s32.totalorder %v458, 3
    %s487 = sld [smem:[#allocation6 + $0x103]]
    %v488 = vstv %s487
    %v489 = vsel %vm485, %v488, %v483
    %v490 = vsel %vm486, %v488, %v484
    %vm491 = vcmp.eq.s32.totalorder %v457, 4
    %vm492 = vcmp.eq.s32.totalorder %v458, 4
    %s493 = sld [smem:[#allocation6 + $0x104]]
    %v494 = vstv %s493
    %v495 = vsel %vm491, %v494, %v489
    %v496 = vsel %vm492, %v494, %v490
    %vm497 = vcmp.eq.s32.totalorder %v457, 5
    %vm498 = vcmp.eq.s32.totalorder %v458, 5
    %s499 = sld [smem:[#allocation6 + $0x105]]
    %v500 = vstv %s499
    %v501 = vsel %vm497, %v500, %v495
    %v502 = vsel %vm498, %v500, %v496
    %vm503 = vcmp.eq.s32.totalorder %v457, 6
    %vm504 = vcmp.eq.s32.totalorder %v458, 6
    %s505 = sld [smem:[#allocation6 + $0x106]]
    %v506 = vstv %s505
    %v507 = vsel %vm503, %v506, %v501
    %v508 = vsel %vm504, %v506, %v502
    %vm509 = vcmp.eq.s32.totalorder %v457, 7
    %vm510 = vcmp.eq.s32.totalorder %v458, 7
    %s511 = sld [smem:[#allocation6 + $0x107]]
    %v512 = vstv %s511
    %v513 = vsel %vm509, %v512, %v507
    %v514 = vsel %vm510, %v512, %v508
    %vm515 = vcmp.eq.s32.totalorder %v457, 8
    %vm516 = vcmp.eq.s32.totalorder %v458, 8
    %s517 = sld [smem:[#allocation6 + $0x108]]
    %v518 = vstv %s517
    %v519 = vsel %vm515, %v518, %v513
    %v520 = vsel %vm516, %v518, %v514
    %vm521 = vcmp.eq.s32.totalorder %v457, 9
    %vm522 = vcmp.eq.s32.totalorder %v458, 9
    %s523 = sld [smem:[#allocation6 + $0x109]]
    %v524 = vstv %s523
    %v525 = vsel %vm521, %v524, %v519
    %v526 = vsel %vm522, %v524, %v520
    %vm527 = vcmp.eq.s32.totalorder %v457, 10
    %vm528 = vcmp.eq.s32.totalorder %v458, 10
    %s529 = sld [smem:[#allocation6 + $0x10a]]
    %v530 = vstv %s529
    %v531 = vsel %vm527, %v530, %v525
    %v532 = vsel %vm528, %v530, %v526
    %vm533 = vcmp.eq.s32.totalorder %v457, 11
    %vm534 = vcmp.eq.s32.totalorder %v458, 11
    %s535 = sld [smem:[#allocation6 + $0x10b]]
    %v536 = vstv %s535
    %v537 = vsel %vm533, %v536, %v531
    %v538 = vsel %vm534, %v536, %v532
    %vm539 = vcmp.eq.s32.totalorder %v457, 12
    %vm540 = vcmp.eq.s32.totalorder %v458, 12
    %s541 = sld [smem:[#allocation6 + $0x10c]]
    %v542 = vstv %s541
    %v543 = vsel %vm539, %v542, %v537
    %v544 = vsel %vm540, %v542, %v538
    %vm545 = vcmp.eq.s32.totalorder %v457, 13
    %vm546 = vcmp.eq.s32.totalorder %v458, 13
    %s547 = sld [smem:[#allocation6 + $0x10d]]
    %v548 = vstv %s547
    %v549 = vsel %vm545, %v548, %v543
    %v550 = vsel %vm546, %v548, %v544
    %vm551 = vcmp.eq.s32.totalorder %v457, 14
    %vm552 = vcmp.eq.s32.totalorder %v458, 14
    %s553 = sld [smem:[#allocation6 + $0x10e]]
    %v554 = vstv %s553
    %v555 = vsel %vm551, %v554, %v549
    %v556 = vsel %vm552, %v554, %v550
    %vm557 = vcmp.eq.s32.totalorder %v457, 15
    %vm558 = vcmp.eq.s32.totalorder %v458, 15
    %s559 = sld [smem:[#allocation6 + $0x10f]]
    %v560 = vstv %s559
    %v561 = vsel %vm557, %v560, %v555
    %v562 = vsel %vm558, %v560, %v556
    %vm563 = vcmp.eq.s32.totalorder %v457, 16
    %vm564 = vcmp.eq.s32.totalorder %v458, 16
    %s565 = sld [smem:[#allocation6 + $0x110]]
    %v566 = vstv %s565
    %v567 = vsel %vm563, %v566, %v561
    %v568 = vsel %vm564, %v566, %v562
    %vm569 = vcmp.eq.s32.totalorder %v457, 17
    %vm570 = vcmp.eq.s32.totalorder %v458, 17
    %s571 = sld [smem:[#allocation6 + $0x111]]
    %v572 = vstv %s571
    %v573 = vsel %vm569, %v572, %v567
    %v574 = vsel %vm570, %v572, %v568
    %vm575 = vcmp.eq.s32.totalorder %v457, 18
    %vm576 = vcmp.eq.s32.totalorder %v458, 18
    %s577 = sld [smem:[#allocation6 + $0x112]]
    %v578 = vstv %s577
    %v579 = vsel %vm575, %v578, %v573
    %v580 = vsel %vm576, %v578, %v574
    %vm581 = vcmp.eq.s32.totalorder %v457, 19
    %vm582 = vcmp.eq.s32.totalorder %v458, 19
    %s583 = sld [smem:[#allocation6 + $0x113]]
    %v584 = vstv %s583
    %v585 = vsel %vm581, %v584, %v579
    %v586 = vsel %vm582, %v584, %v580
    %vm587 = vcmp.eq.s32.totalorder %v457, 20
    %vm588 = vcmp.eq.s32.totalorder %v458, 20
    %s589 = sld [smem:[#allocation6 + $0x114]]
    %v590 = vstv %s589
    %v591 = vsel %vm587, %v590, %v585
    %v592 = vsel %vm588, %v590, %v586
    %vm593 = vcmp.eq.s32.totalorder %v457, 21
    %vm594 = vcmp.eq.s32.totalorder %v458, 21
    %s595 = sld [smem:[#allocation6 + $0x115]]
    %v596 = vstv %s595
    %v597 = vsel %vm593, %v596, %v591
    %v598 = vsel %vm594, %v596, %v592
    %vm599 = vcmp.eq.s32.totalorder %v457, 22
    %vm600 = vcmp.eq.s32.totalorder %v458, 22
    %s601 = sld [smem:[#allocation6 + $0x116]]
    %v602 = vstv %s601
    %v603 = vsel %vm599, %v602, %v597
    %v604 = vsel %vm600, %v602, %v598
    %vm605 = vcmp.eq.s32.totalorder %v457, 23
    %vm606 = vcmp.eq.s32.totalorder %v458, 23
    %s607 = sld [smem:[#allocation6 + $0x117]]
    %v608 = vstv %s607
    %v609 = vsel %vm605, %v608, %v603
    %v610 = vsel %vm606, %v608, %v604
    %vm611 = vcmp.eq.s32.totalorder %v457, 24
    %vm612 = vcmp.eq.s32.totalorder %v458, 24
    %s613 = sld [smem:[#allocation6 + $0x118]]
    %v614 = vstv %s613
    %v615 = vsel %vm611, %v614, %v609
    %v616 = vsel %vm612, %v614, %v610
    %vm617 = vcmp.eq.s32.totalorder %v457, 25
    %vm618 = vcmp.eq.s32.totalorder %v458, 25
    %s619 = sld [smem:[#allocation6 + $0x119]]
    %v620 = vstv %s619
    %v621 = vsel %vm617, %v620, %v615
    %v622 = vsel %vm618, %v620, %v616
    %vm623 = vcmp.eq.s32.totalorder %v457, 26
    %vm624 = vcmp.eq.s32.totalorder %v458, 26
    %s625 = sld [smem:[#allocation6 + $0x11a]]
    %v626 = vstv %s625
    %v627 = vsel %vm623, %v626, %v621
    %v628 = vsel %vm624, %v626, %v622
    %vm629 = vcmp.eq.s32.totalorder %v457, 27
    %vm630 = vcmp.eq.s32.totalorder %v458, 27
    %s631 = sld [smem:[#allocation6 + $0x11b]]
    %v632 = vstv %s631
    %v633 = vsel %vm629, %v632, %v627
    %v634 = vsel %vm630, %v632, %v628
    %vm635 = vcmp.eq.s32.totalorder %v457, 28
    %vm636 = vcmp.eq.s32.totalorder %v458, 28
    %s637 = sld [smem:[#allocation6 + $0x11c]]
    %v638 = vstv %s637
    %v639 = vsel %vm635, %v638, %v633
    %v640 = vsel %vm636, %v638, %v634
    %vm641 = vcmp.eq.s32.totalorder %v457, 29
    %vm642 = vcmp.eq.s32.totalorder %v458, 29
    %s643 = sld [smem:[#allocation6 + $0x11d]]
    %v644 = vstv %s643
    %v645 = vsel %vm641, %v644, %v639
    %v646 = vsel %vm642, %v644, %v640
    %vm647 = vcmp.eq.s32.totalorder %v457, 30
    %vm648 = vcmp.eq.s32.totalorder %v458, 30
    %s649 = sld [smem:[#allocation6 + $0x11e]]
    %v650 = vstv %s649
    %v651 = vsel %vm647, %v650, %v645
    %v652 = vsel %vm648, %v650, %v646
    %vm653 = vcmp.eq.s32.totalorder %v457, 31
    %vm654 = vcmp.eq.s32.totalorder %v458, 31
    %s655 = sld [smem:[#allocation6 + $0x11f]]
    %v656 = vstv %s655
    %v657 = vsel %vm653, %v656, %v651
    %v658 = vsel %vm654, %v656, %v652
    %v659 = vadd.f32 %v452, %v657
    %v660 = vadd.f32 %v453, %v658
    %s661 = scalar_lea.vmem [#allocation2], 24
    %v662 = vld [vmem:[%s661] sm:$0xf]
    %v663 = vld [vmem:[%s661 + $0x4] sm:$0xf]
    %v664 = vunpack.c.l.b16 %v662
    %v665 = vunpack.c.l.b16 %v663
    %vm666 = vcmp.ge.s32.totalorder %v664, 0
    %vm667 = vcmp.ge.s32.totalorder %v665, 0
    %v668 = vsel %vm666, 1, 0
    %v669 = vsel %vm667, 1, 0
    %v670 = vcvt.s32.f32 %v668
    %v671 = vcvt.s32.f32 %v669
    %v672 = vadd.f32 %v465, %v670
    %v673 = vadd.f32 %v466, %v671
    %vm674 = vcmp.eq.s32.totalorder %v664, 0
    %vm675 = vcmp.eq.s32.totalorder %v665, 0
    %s676 = sld [smem:[#allocation6 + $0x180]]
    %v677 = vstv %s676
    %v678 = vsel %vm674, %v677, 0.0
    %v679 = vsel %vm675, %v677, 0.0
    %vm680 = vcmp.eq.s32.totalorder %v664, 1
    %vm681 = vcmp.eq.s32.totalorder %v665, 1
    %s682 = sld [smem:[#allocation6 + $0x181]]
    %v683 = vstv %s682
    %v684 = vsel %vm680, %v683, %v678
    %v685 = vsel %vm681, %v683, %v679
    %vm686 = vcmp.eq.s32.totalorder %v664, 2
    %vm687 = vcmp.eq.s32.totalorder %v665, 2
    %s688 = sld [smem:[#allocation6 + $0x182]]
    %v689 = vstv %s688
    %v690 = vsel %vm686, %v689, %v684
    %v691 = vsel %vm687, %v689, %v685
    %vm692 = vcmp.eq.s32.totalorder %v664, 3
    %vm693 = vcmp.eq.s32.totalorder %v665, 3
    %s694 = sld [smem:[#allocation6 + $0x183]]
    %v695 = vstv %s694
    %v696 = vsel %vm692, %v695, %v690
    %v697 = vsel %vm693, %v695, %v691
    %vm698 = vcmp.eq.s32.totalorder %v664, 4
    %vm699 = vcmp.eq.s32.totalorder %v665, 4
    %s700 = sld [smem:[#allocation6 + $0x184]]
    %v701 = vstv %s700
    %v702 = vsel %vm698, %v701, %v696
    %v703 = vsel %vm699, %v701, %v697
    %vm704 = vcmp.eq.s32.totalorder %v664, 5
    %vm705 = vcmp.eq.s32.totalorder %v665, 5
    %s706 = sld [smem:[#allocation6 + $0x185]]
    %v707 = vstv %s706
    %v708 = vsel %vm704, %v707, %v702
    %v709 = vsel %vm705, %v707, %v703
    %vm710 = vcmp.eq.s32.totalorder %v664, 6
    %vm711 = vcmp.eq.s32.totalorder %v665, 6
    %s712 = sld [smem:[#allocation6 + $0x186]]
    %v713 = vstv %s712
    %v714 = vsel %vm710, %v713, %v708
    %v715 = vsel %vm711, %v713, %v709
    %vm716 = vcmp.eq.s32.totalorder %v664, 7
    %vm717 = vcmp.eq.s32.totalorder %v665, 7
    %s718 = sld [smem:[#allocation6 + $0x187]]
    %v719 = vstv %s718
    %v720 = vsel %vm716, %v719, %v714
    %v721 = vsel %vm717, %v719, %v715
    %vm722 = vcmp.eq.s32.totalorder %v664, 8
    %vm723 = vcmp.eq.s32.totalorder %v665, 8
    %s724 = sld [smem:[#allocation6 + $0x188]]
    %v725 = vstv %s724
    %v726 = vsel %vm722, %v725, %v720
    %v727 = vsel %vm723, %v725, %v721
    %vm728 = vcmp.eq.s32.totalorder %v664, 9
    %vm729 = vcmp.eq.s32.totalorder %v665, 9
    %s730 = sld [smem:[#allocation6 + $0x189]]
    %v731 = vstv %s730
    %v732 = vsel %vm728, %v731, %v726
    %v733 = vsel %vm729, %v731, %v727
    %vm734 = vcmp.eq.s32.totalorder %v664, 10
    %vm735 = vcmp.eq.s32.totalorder %v665, 10
    %s736 = sld [smem:[#allocation6 + $0x18a]]
    %v737 = vstv %s736
    %v738 = vsel %vm734, %v737, %v732
    %v739 = vsel %vm735, %v737, %v733
    %vm740 = vcmp.eq.s32.totalorder %v664, 11
    %vm741 = vcmp.eq.s32.totalorder %v665, 11
    %s742 = sld [smem:[#allocation6 + $0x18b]]
    %v743 = vstv %s742
    %v744 = vsel %vm740, %v743, %v738
    %v745 = vsel %vm741, %v743, %v739
    %vm746 = vcmp.eq.s32.totalorder %v664, 12
    %vm747 = vcmp.eq.s32.totalorder %v665, 12
    %s748 = sld [smem:[#allocation6 + $0x18c]]
    %v749 = vstv %s748
    %v750 = vsel %vm746, %v749, %v744
    %v751 = vsel %vm747, %v749, %v745
    %vm752 = vcmp.eq.s32.totalorder %v664, 13
    %vm753 = vcmp.eq.s32.totalorder %v665, 13
    %s754 = sld [smem:[#allocation6 + $0x18d]]
    %v755 = vstv %s754
    %v756 = vsel %vm752, %v755, %v750
    %v757 = vsel %vm753, %v755, %v751
    %vm758 = vcmp.eq.s32.totalorder %v664, 14
    %vm759 = vcmp.eq.s32.totalorder %v665, 14
    %s760 = sld [smem:[#allocation6 + $0x18e]]
    %v761 = vstv %s760
    %v762 = vsel %vm758, %v761, %v756
    %v763 = vsel %vm759, %v761, %v757
    %vm764 = vcmp.eq.s32.totalorder %v664, 15
    %vm765 = vcmp.eq.s32.totalorder %v665, 15
    %s766 = sld [smem:[#allocation6 + $0x18f]]
    %v767 = vstv %s766
    %v768 = vsel %vm764, %v767, %v762
    %v769 = vsel %vm765, %v767, %v763
    %vm770 = vcmp.eq.s32.totalorder %v664, 16
    %vm771 = vcmp.eq.s32.totalorder %v665, 16
    %s772 = sld [smem:[#allocation6 + $0x190]]
    %v773 = vstv %s772
    %v774 = vsel %vm770, %v773, %v768
    %v775 = vsel %vm771, %v773, %v769
    %vm776 = vcmp.eq.s32.totalorder %v664, 17
    %vm777 = vcmp.eq.s32.totalorder %v665, 17
    %s778 = sld [smem:[#allocation6 + $0x191]]
    %v779 = vstv %s778
    %v780 = vsel %vm776, %v779, %v774
    %v781 = vsel %vm777, %v779, %v775
    %vm782 = vcmp.eq.s32.totalorder %v664, 18
    %vm783 = vcmp.eq.s32.totalorder %v665, 18
    %s784 = sld [smem:[#allocation6 + $0x192]]
    %v785 = vstv %s784
    %v786 = vsel %vm782, %v785, %v780
    %v787 = vsel %vm783, %v785, %v781
    %vm788 = vcmp.eq.s32.totalorder %v664, 19
    %vm789 = vcmp.eq.s32.totalorder %v665, 19
    %s790 = sld [smem:[#allocation6 + $0x193]]
    %v791 = vstv %s790
    %v792 = vsel %vm788, %v791, %v786
    %v793 = vsel %vm789, %v791, %v787
    %vm794 = vcmp.eq.s32.totalorder %v664, 20
    %vm795 = vcmp.eq.s32.totalorder %v665, 20
    %s796 = sld [smem:[#allocation6 + $0x194]]
    %v797 = vstv %s796
    %v798 = vsel %vm794, %v797, %v792
    %v799 = vsel %vm795, %v797, %v793
    %vm800 = vcmp.eq.s32.totalorder %v664, 21
    %vm801 = vcmp.eq.s32.totalorder %v665, 21
    %s802 = sld [smem:[#allocation6 + $0x195]]
    %v803 = vstv %s802
    %v804 = vsel %vm800, %v803, %v798
    %v805 = vsel %vm801, %v803, %v799
    %vm806 = vcmp.eq.s32.totalorder %v664, 22
    %vm807 = vcmp.eq.s32.totalorder %v665, 22
    %s808 = sld [smem:[#allocation6 + $0x196]]
    %v809 = vstv %s808
    %v810 = vsel %vm806, %v809, %v804
    %v811 = vsel %vm807, %v809, %v805
    %vm812 = vcmp.eq.s32.totalorder %v664, 23
    %vm813 = vcmp.eq.s32.totalorder %v665, 23
    %s814 = sld [smem:[#allocation6 + $0x197]]
    %v815 = vstv %s814
    %v816 = vsel %vm812, %v815, %v810
    %v817 = vsel %vm813, %v815, %v811
    %vm818 = vcmp.eq.s32.totalorder %v664, 24
    %vm819 = vcmp.eq.s32.totalorder %v665, 24
    %s820 = sld [smem:[#allocation6 + $0x198]]
    %v821 = vstv %s820
    %v822 = vsel %vm818, %v821, %v816
    %v823 = vsel %vm819, %v821, %v817
    %vm824 = vcmp.eq.s32.totalorder %v664, 25
    %vm825 = vcmp.eq.s32.totalorder %v665, 25
    %s826 = sld [smem:[#allocation6 + $0x199]]
    %v827 = vstv %s826
    %v828 = vsel %vm824, %v827, %v822
    %v829 = vsel %vm825, %v827, %v823
    %vm830 = vcmp.eq.s32.totalorder %v664, 26
    %vm831 = vcmp.eq.s32.totalorder %v665, 26
    %s832 = sld [smem:[#allocation6 + $0x19a]]
    %v833 = vstv %s832
    %v834 = vsel %vm830, %v833, %v828
    %v835 = vsel %vm831, %v833, %v829
    %vm836 = vcmp.eq.s32.totalorder %v664, 27
    %vm837 = vcmp.eq.s32.totalorder %v665, 27
    %s838 = sld [smem:[#allocation6 + $0x19b]]
    %v839 = vstv %s838
    %v840 = vsel %vm836, %v839, %v834
    %v841 = vsel %vm837, %v839, %v835
    %vm842 = vcmp.eq.s32.totalorder %v664, 28
    %vm843 = vcmp.eq.s32.totalorder %v665, 28
    %s844 = sld [smem:[#allocation6 + $0x19c]]
    %v845 = vstv %s844
    %v846 = vsel %vm842, %v845, %v840
    %v847 = vsel %vm843, %v845, %v841
    %vm848 = vcmp.eq.s32.totalorder %v664, 29
    %vm849 = vcmp.eq.s32.totalorder %v665, 29
    %s850 = sld [smem:[#allocation6 + $0x19d]]
    %v851 = vstv %s850
    %v852 = vsel %vm848, %v851, %v846
    %v853 = vsel %vm849, %v851, %v847
    %vm854 = vcmp.eq.s32.totalorder %v664, 30
    %vm855 = vcmp.eq.s32.totalorder %v665, 30
    %s856 = sld [smem:[#allocation6 + $0x19e]]
    %v857 = vstv %s856
    %v858 = vsel %vm854, %v857, %v852
    %v859 = vsel %vm855, %v857, %v853
    %vm860 = vcmp.eq.s32.totalorder %v664, 31
    %vm861 = vcmp.eq.s32.totalorder %v665, 31
    %s862 = sld [smem:[#allocation6 + $0x19f]]
    %v863 = vstv %s862
    %v864 = vsel %vm860, %v863, %v858
    %v865 = vsel %vm861, %v863, %v859
    %v866 = vadd.f32 %v659, %v864
    %v867 = vadd.f32 %v660, %v865
    %vm868 = vcmp.eq.f32.partialorder %v672, 1.0
    %vm869 = vcmp.eq.f32.partialorder %v673, 1.0
    %v870 = vsel %vm868, 1.0, 0.0
    %v871 = vsel %vm869, 1.0, 0.0
    %vm872 = vcmp.eq.f32.partialorder %v672, 2.0
    %vm873 = vcmp.eq.f32.partialorder %v673, 2.0
    %v874 = vsel %vm872, 0.5, %v870
    %v875 = vsel %vm873, 0.5, %v871
    %vm876 = vcmp.eq.f32.partialorder %v672, 3.0
    %vm877 = vcmp.eq.f32.partialorder %v673, 3.0
    %v878 = vsel %vm876, 0.33333334, %v874
    %v879 = vsel %vm877, 0.33333334, %v875
    %vm880 = vcmp.eq.f32.partialorder %v672, 4.0
    %vm881 = vcmp.eq.f32.partialorder %v673, 4.0
    %v882 = vsel %vm880, 0.25, %v878
    %v883 = vsel %vm881, 0.25, %v879
    %v884 = vmul.f32 %v866, %v882
    %v885 = vmul.f32 %v867, %v883
    %886 = vst [vmem:[#allocation7] sm:$0xff] %v884
    %887 = vst [vmem:[#allocation7 + $0x8] sm:$0xff] %v885
    // Predicated region
    $region18: #{tpu_custom_call.1} parent=1 // pred_check
      _
    $region19: #{tpu_custom_call.1} parent=1 // pred_check_branch
      %889 = sbr.rel (0) target = $region21
    $region20: #{tpu_custom_call.1} parent=1 // pred_region
      %891 = vsyncadd [#allocation4], 0
      %s892 = sshll.u32 [#allocation7], 4
      %s893 = int_to_ptr.vmem [resolvable:$true] %s892
      %s894 = sshll.u32 %s2, 4
      %s895 = int_to_ptr.hbm [resolvable:$true] %s894
      %900 = dma.vmem_to_hbm [thread:$0]  %s893, 256, %s895, [#allocation4], 128, 128, 8
    $region21: #{tpu_custom_call.1} parent=1 // pred_fallthru
      _
    // Predicated region
    $region22: #{tpu_custom_call.1} parent=1 // pred_check
      _
    $region23: #{tpu_custom_call.1} parent=1 // pred_check_branch
      %902 = sbr.rel (0) target = $region25
    $region24: #{tpu_custom_call.1} parent=1 // pred_region
      %904 = dma.done [#allocation4], 256
    $region25: #{tpu_custom_call.1} parent=1 // pred_fallthru
      _
    %905 = vsyncpa [#allocation3], 1
    %906 = vsyncpa [#allocation4], 1
    %907 = vsyncpa [#allocation5], 1

</llo_original>
